<compile_context>
chip_gen: v7x
topology: tpu7x:2x2x1
jax: 0.10.0
libtpu: 0.0.40
codegen_flags: <defaults>
</compile_context>

<pallas_src>
import math
import functools

import jax
import jax.numpy as jnp
from jax.experimental import pallas as pl
from jax.experimental.pallas import tpu as pltpu


def _round_up(n, m):
    return ((n + m - 1) // m) * m


def _mha_kernel(x_ref, wqkv_ref, bqkv_ref, wo_ref, bo_ref, o_ref,
                *, n_heads, d_k, seq, d_model):
    """One grid step == one batch element: [S, D] -> [S, D_padded]."""
    D = d_model
    mxu_dtype = wqkv_ref.dtype          # bf16 weights -> bf16 MXU operands

    # ---- fused QKV projection (single MXU push, lane-dense N = padded 3D) ----
    x = x_ref[...].astype(mxu_dtype)                               # [S, D]
    qkv = jnp.dot(x, wqkv_ref[...],
                  preferred_element_type=jnp.float32) + bqkv_ref[...]  # [S, Np] f32

    q = qkv[:, 0 * D:1 * D]     # 1/sqrt(d_k) scale already folded into wq/bq
    k = qkv[:, 1 * D:2 * D]
    v = qkv[:, 2 * D:3 * D]

    # ---- head-batched attention: one scores einsum / softmax / PV einsum ----
    q3 = pltpu.einshape("shd->hsd", q.reshape(seq, n_heads, d_k))  # [H, S, dk]
    k3 = pltpu.einshape("shd->hsd", k.reshape(seq, n_heads, d_k))
    v3 = pltpu.einshape("shd->hsd", v.reshape(seq, n_heads, d_k))

    # scores kept in f32 (feeds exp); softmax entirely in f32 (v5e has no bf16 VPU/EUP)
    s = jnp.einsum("hqd,hkd->hqk", q3, k3,
                   preferred_element_type=jnp.float32)             # [H, S, S]
    s = s - jnp.max(s, axis=-1, keepdims=True)
    p = jnp.exp(s)
    p = p * pl.reciprocal(jnp.sum(p, axis=-1, keepdims=True), approx=True)

    # PV matmul with bf16 MXU operands, f32 accumulation
    ctx3 = jnp.einsum("hqk,hkd->hqd",
                      p.astype(mxu_dtype), v3.astype(mxu_dtype),
                      preferred_element_type=jnp.float32)          # [H, S, dk]

    # merge heads back (register-resident; no VMEM scratch round trip)
    ctx = pltpu.einshape("hsd->shd", ctx3).reshape(seq, D)         # [S, D] f32

    # ---- output projection, lane-dense [S, Dp] store (unmasked vst) ----
    out = jnp.dot(ctx.astype(wo_ref.dtype), wo_ref[...],
                  preferred_element_type=jnp.float32) + bo_ref[...]
    o_ref[...] = out.astype(o_ref.dtype)


def fuse_mha_params(params, *, n_heads, mxu_dtype=jnp.bfloat16, lane=128):
    """One-time (param-load-time) weight fusion — hoisted out of the per-call path.

    nn.Linear weights are [out, in]; pre-transpose to [in, out] so the kernel
    computes y = x @ W + b.  The attention scale 1/sqrt(d_k) is folded into the
    Q projection (exact: a linear rescale of Q).  Q/K/V weights + biases are
    fused into one [D, 3D] matmul and the lane (output) dims are zero-padded to
    a multiple of 128 so every MXU result / bias add / store is lane-dense.
    """
    D = params["wq"].shape[0]
    d_k = D // n_heads
    scale = 1.0 / math.sqrt(d_k)

    w_qkv = jnp.concatenate(
        [params["wq"].T * scale, params["wk"].T, params["wv"].T], axis=1)   # [D, 3D]
    b_qkv = jnp.concatenate(
        [params["bq"] * scale, params["bk"], params["bv"]])[None, :]        # [1, 3D]
    wo = params["wo"].T                                                     # [D, D]
    bo = params["bo"][None, :]                                              # [1, D]

    n_p = _round_up(3 * D, lane)
    d_p = _round_up(D, lane)
    w_qkv = jnp.pad(w_qkv, ((0, 0), (0, n_p - 3 * D)))
    b_qkv = jnp.pad(b_qkv, ((0, 0), (0, n_p - 3 * D)))
    wo = jnp.pad(wo, ((0, 0), (0, d_p - D)))
    bo = jnp.pad(bo, ((0, 0), (0, d_p - D)))

    return {
        "w_qkv": w_qkv.astype(mxu_dtype),       # bf16 MXU operands (f32 accumulate)
        "b_qkv": b_qkv.astype(jnp.float32),     # biases stay f32 (added post-accum)
        "wo": wo.astype(mxu_dtype),
        "bo": bo.astype(jnp.float32),
    }


def multi_headed_self_attention(x, fused, *, n_heads):
    """Fused self-attention forward (mask=None, dropout identity)."""
    B, S, D = x.shape
    d_k = D // n_heads
    n_p = fused["w_qkv"].shape[1]               # padded 3*D (multiple of 128)
    d_p = fused["wo"].shape[1]                  # padded D   (multiple of 128)

    x2 = x.reshape(B * S, D)                    # free (contiguous) reshape

    kernel = functools.partial(_mha_kernel, n_heads=n_heads, d_k=d_k,
                               seq=S, d_model=D)

    out2 = pl.pallas_call(
        kernel,
        out_shape=jax.ShapeDtypeStruct((B * S, d_p), x.dtype),
        grid_spec=pltpu.PrefetchScalarGridSpec(
            num_scalar_prefetch=0,
            grid=(B,),                                         # batch grid axis
            in_specs=[
                # activations streamed per batch (S must be a multiple of 8)
                pl.BlockSpec((S, D), lambda b: (b, 0)),
                # weights/biases: constant block index -> VMEM-resident, no re-DMA
                pl.BlockSpec((D, n_p), lambda b: (0, 0)),
                pl.BlockSpec((1, n_p), lambda b: (0, 0)),
                pl.BlockSpec((D, d_p), lambda b: (0, 0)),
                pl.BlockSpec((1, d_p), lambda b: (0, 0)),
            ],
            out_specs=pl.BlockSpec((S, d_p), lambda b: (b, 0)),  # lane-dense store
        ),
        compiler_params=pltpu.CompilerParams(
            dimension_semantics=("parallel",)),   # shards across v7x's 2 TCs
    )(x2, fused["w_qkv"], fused["b_qkv"], fused["wo"], fused["bo"])

    # drop the zero padding columns and restore [B, S, D]
    return out2[:, :D].reshape(B, S, D)


def multi_headed_attention(query, key, value, fused, *, n_heads):
    """Matches MultiHeadedAttention.forward for JRCL's usage.

    JRCL only ever calls this as self-attention (query == key == value,
    mask=None); `key`/`value` are accepted for API parity but the kernel uses
    `query` for all three projections.
    """
    # TODO(synk): general cross-attention would use per-input projections
    #             instead of the fused [D, 3D] weight.
    del key, value
    return multi_headed_self_attention(query, fused, n_heads=n_heads)


def _reference(query, key, value, params, *, n_heads):
    """Pure-JAX reference mirroring the PyTorch module exactly (f32)."""
    B, S, D = query.shape
    d_k = D // n_heads

    def lin(x, w, b):
        return x @ w.T + b

    def split_heads(x):
        return x.reshape(B, S, n_heads, d_k).transpose(0, 2, 1, 3)   # [B,H,S,dk]

    q = split_heads(lin(query, params["wq"], params["bq"]))
    k = split_heads(lin(key, params["wk"], params["bk"]))
    v = split_heads(lin(value, params["wv"], params["bv"]))

    scores = jnp.einsum("bhqd,bhkd->bhqk", q, k) / math.sqrt(d_k)
    p = jax.nn.softmax(scores, axis=-1)
    x = jnp.einsum("bhqk,bhkd->bhqd", p, v)
    x = x.transpose(0, 2, 1, 3).reshape(B, S, D)
    return lin(x, params["wo"], params["bo"])


if __name__ == "__main__":
    B, S, D, H = 2, 8, 32, 4   # batch, seq, d_model, heads  (d_k = 8)

    key0 = jax.random.PRNGKey(0)
    ks = jax.random.split(key0, 10)

    # Deterministic synthetic params (PyTorch nn.Linear shapes: W [out, in], b [out]).
    bound = 1.0 / math.sqrt(D)
    params = {
        "wq": jax.random.uniform(ks[0], (D, D), jnp.float32, -bound, bound),
        "bq": jax.random.uniform(ks[1], (D,), jnp.float32, -bound, bound),
        "wk": jax.random.uniform(ks[2], (D, D), jnp.float32, -bound, bound),
        "bk": jax.random.uniform(ks[3], (D,), jnp.float32, -bound, bound),
        "wv": jax.random.uniform(ks[4], (D, D), jnp.float32, -bound, bound),
        "bv": jax.random.uniform(ks[5], (D,), jnp.float32, -bound, bound),
        "wo": jax.random.uniform(ks[6], (D, D), jnp.float32, -bound, bound),
        "bo": jax.random.uniform(ks[7], (D,), jnp.float32, -bound, bound),
    }

    x = jax.random.normal(ks[8], (B, S, D), jnp.float32)

    # Weight fusion/padding/bf16-cast done once, outside the per-call path.
    fused = fuse_mha_params(params, n_heads=H)

    mha = jax.jit(functools.partial(multi_headed_attention, n_heads=H))
    out = mha(x, x, x, fused)
    out = jax.block_until_ready(out)

    ref = _reference(x, x, x, params, n_heads=H)
    assert out.shape == (B, S, D)
    # tolerance covers bf16 MXU operands + the approximate (EUP vrcp) softmax
    # reciprocal; the f32 reference is exact.
    assert jnp.allclose(out, ref, atol=2e-2, rtol=2e-2), "mismatch vs reference"

    print("KERNEL_OK")
</pallas_src>

<mosaic_0001>
module attributes {stable_mosaic.version = 11 : i64} {
  func.func @_mha_kernel(%arg0: i32, %arg1: memref<8x32xf32, #tpu.memory_space<vmem>>, %arg2: memref<32x128xbf16, #tpu.memory_space<vmem>>, %arg3: memref<1x128xf32, #tpu.memory_space<vmem>>, %arg4: memref<32x128xbf16, #tpu.memory_space<vmem>>, %arg5: memref<1x128xf32, #tpu.memory_space<vmem>>, %arg6: memref<8x128xf32, #tpu.memory_space<vmem>>) attributes {dimension_semantics = [#tpu.dimension_semantics<parallel>], iteration_bounds = array<i64: 2>, scalar_prefetch = 0 : i64, scratch_operands = 0 : i64, tpu.core_type = #tpu.core_type<tc>, window_params = [{transform_indices = @transform_0, window_bounds = array<i64: 8, 32>}, {pipeline_mode = #tpu.pipeline_mode<synchronous>, transform_indices = @transform_1, window_bounds = array<i64: 32, 128>}, {pipeline_mode = #tpu.pipeline_mode<synchronous>, transform_indices = @transform_2, window_bounds = array<i64: 1, 128>}, {pipeline_mode = #tpu.pipeline_mode<synchronous>, transform_indices = @transform_3, window_bounds = array<i64: 32, 128>}, {pipeline_mode = #tpu.pipeline_mode<synchronous>, transform_indices = @transform_4, window_bounds = array<i64: 1, 128>}, {transform_indices = @transform_5, window_bounds = array<i64: 8, 128>}]} {
    %c0 = arith.constant 0 : index
    %c0_0 = arith.constant 0 : index
    %0 = vector.load %arg1[%c0, %c0_0] : memref<8x32xf32, #tpu.memory_space<vmem>>, vector<8x32xf32>
    %1 = arith.truncf %0 : vector<8x32xf32> to vector<8x32xbf16>
    %c0_1 = arith.constant 0 : index
    %c0_2 = arith.constant 0 : index
    %2 = vector.load %arg2[%c0_1, %c0_2] : memref<32x128xbf16, #tpu.memory_space<vmem>>, vector<32x128xbf16>
    %cst = arith.constant dense<0.000000e+00> : vector<8x128xf32>
    %3 = tpu.matmul %1, %2, %cst {dimension_numbers = #tpu.dot_dimension_numbers<[1], [0], [0], [1], [0, 0, 1, 1], [], []>} : vector<8x32xbf16>, vector<32x128xbf16>, vector<8x128xf32> -> vector<8x128xf32>
    %c0_3 = arith.constant 0 : index
    %c0_4 = arith.constant 0 : index
    %4 = vector.load %arg3[%c0_3, %c0_4] : memref<1x128xf32, #tpu.memory_space<vmem>>, vector<1x128xf32>
    %5 = vector.broadcast %4 : vector<1x128xf32> to vector<8x128xf32>
    %6 = arith.addf %3, %5 : vector<8x128xf32>
    %7 = vector.extract_strided_slice %6 {offsets = [0, 0], sizes = [8, 32], strides = [1, 1]} : vector<8x128xf32> to vector<8x32xf32>
    %8 = vector.extract_strided_slice %6 {offsets = [0, 32], sizes = [8, 32], strides = [1, 1]} : vector<8x128xf32> to vector<8x32xf32>
    %9 = vector.extract_strided_slice %6 {offsets = [0, 64], sizes = [8, 32], strides = [1, 1]} : vector<8x128xf32> to vector<8x32xf32>
    %10 = vector.shape_cast %7 : vector<8x32xf32> to vector<8x4x8xf32>
    %11 = tpu.transpose %10, [1, 0, 2] : vector<8x4x8xf32> -> vector<4x8x8xf32>
    %12 = vector.shape_cast %8 : vector<8x32xf32> to vector<8x4x8xf32>
    %13 = tpu.transpose %12, [1, 0, 2] : vector<8x4x8xf32> -> vector<4x8x8xf32>
    %14 = vector.shape_cast %9 : vector<8x32xf32> to vector<8x4x8xf32>
    %15 = tpu.transpose %14, [1, 0, 2] : vector<8x4x8xf32> -> vector<4x8x8xf32>
    "tpu.trace_start"() <{level = 10 : i32, message = "hqd,hkd->hqk"}> : () -> ()
    %cst_5 = arith.constant dense<0.000000e+00> : vector<4x8x8xf32>
    %16 = tpu.matmul %11, %13, %cst_5 {dimension_numbers = #tpu.dot_dimension_numbers<[2], [2], [1], [1], [0, 0, 0, 1, 1, 1], [0], [0]>} : vector<4x8x8xf32>, vector<4x8x8xf32>, vector<4x8x8xf32> -> vector<4x8x8xf32>
    "tpu.trace_stop"() : () -> ()
    %cst_6 = arith.constant dense<0xFF800000> : vector<4x8xf32>
    %17 = vector.multi_reduction <maximumf>, %16, %cst_6 [2] : vector<4x8x8xf32> to vector<4x8xf32>
    %18 = vector.shape_cast %17 : vector<4x8xf32> to vector<4x8x1xf32>
    %19 = vector.broadcast %18 : vector<4x8x1xf32> to vector<4x8x8xf32>
    %20 = arith.subf %16, %19 : vector<4x8x8xf32>
    %21 = math.exp %20 : vector<4x8x8xf32>
    %cst_7 = arith.constant dense<0.000000e+00> : vector<4x8xf32>
    %22 = vector.multi_reduction <add>, %21, %cst_7 [2] : vector<4x8x8xf32> to vector<4x8xf32>
    %23 = vector.shape_cast %22 : vector<4x8xf32> to vector<4x8x1xf32>
    %24 = tpu.reciprocal %23 {approx = true} : vector<4x8x1xf32> -> vector<4x8x1xf32>
    %25 = vector.broadcast %24 : vector<4x8x1xf32> to vector<4x8x8xf32>
    %26 = arith.mulf %21, %25 : vector<4x8x8xf32>
    %27 = arith.truncf %26 : vector<4x8x8xf32> to vector<4x8x8xbf16>
    %28 = arith.truncf %15 : vector<4x8x8xf32> to vector<4x8x8xbf16>
    "tpu.trace_start"() <{level = 10 : i32, message = "hqk,hkd->hqd"}> : () -> ()
    %cst_8 = arith.constant dense<0.000000e+00> : vector<4x8x8xf32>
    %29 = tpu.matmul %27, %28, %cst_8 {dimension_numbers = #tpu.dot_dimension_numbers<[2], [1], [1], [2], [0, 0, 0, 1, 1, 2], [0], [0]>} : vector<4x8x8xbf16>, vector<4x8x8xbf16>, vector<4x8x8xf32> -> vector<4x8x8xf32>
    "tpu.trace_stop"() : () -> ()
    %30 = tpu.transpose %29, [1, 0, 2] : vector<4x8x8xf32> -> vector<8x4x8xf32>
    %31 = vector.shape_cast %30 : vector<8x4x8xf32> to vector<8x32xf32>
    %32 = arith.truncf %31 : vector<8x32xf32> to vector<8x32xbf16>
    %c0_9 = arith.constant 0 : index
    %c0_10 = arith.constant 0 : index
    %33 = vector.load %arg4[%c0_9, %c0_10] : memref<32x128xbf16, #tpu.memory_space<vmem>>, vector<32x128xbf16>
    %cst_11 = arith.constant dense<0.000000e+00> : vector<8x128xf32>
    %34 = tpu.matmul %32, %33, %cst_11 {dimension_numbers = #tpu.dot_dimension_numbers<[1], [0], [0], [1], [0, 0, 1, 1], [], []>} : vector<8x32xbf16>, vector<32x128xbf16>, vector<8x128xf32> -> vector<8x128xf32>
    %c0_12 = arith.constant 0 : index
    %c0_13 = arith.constant 0 : index
    %35 = vector.load %arg5[%c0_12, %c0_13] : memref<1x128xf32, #tpu.memory_space<vmem>>, vector<1x128xf32>
    %36 = vector.broadcast %35 : vector<1x128xf32> to vector<8x128xf32>
    %37 = arith.addf %34, %36 : vector<8x128xf32>
    %c0_14 = arith.constant 0 : index
    %c0_15 = arith.constant 0 : index
    %38 = vector.load %arg6[%c0_14, %c0_15] : memref<8x128xf32, #tpu.memory_space<vmem>>, vector<8x128xf32>
    tpu.vector_store %arg6[%c0_14, %c0_15], %37 {strides = array<i32>} : memref<8x128xf32, #tpu.memory_space<vmem>>, vector<8x128xf32>,
    return
  }
  func.func @transform_0(%arg0: i32) -> (i32, i32) {
    %c0_i32 = arith.constant 0 : i32
    %c0_i32_0 = arith.constant 0 : i32
    return %arg0, %c0_i32 : i32, i32
  }
  func.func @transform_1(%arg0: i32) -> (i32, i32) {
    %c0_i32 = arith.constant 0 : i32
    %c0_i32_0 = arith.constant 0 : i32
    %c0_i32_1 = arith.constant 0 : i32
    return %c0_i32, %c0_i32_0 : i32, i32
  }
  func.func @transform_2(%arg0: i32) -> (i32, i32) {
    %c0_i32 = arith.constant 0 : i32
    %c0_i32_0 = arith.constant 0 : i32
    %c0_i32_1 = arith.constant 0 : i32
    return %c0_i32, %c0_i32_0 : i32, i32
  }
  func.func @transform_3(%arg0: i32) -> (i32, i32) {
    %c0_i32 = arith.constant 0 : i32
    %c0_i32_0 = arith.constant 0 : i32
    %c0_i32_1 = arith.constant 0 : i32
    return %c0_i32, %c0_i32_0 : i32, i32
  }
  func.func @transform_4(%arg0: i32) -> (i32, i32) {
    %c0_i32 = arith.constant 0 : i32
    %c0_i32_0 = arith.constant 0 : i32
    %c0_i32_1 = arith.constant 0 : i32
    return %c0_i32, %c0_i32_0 : i32, i32
  }
  func.func @transform_5(%arg0: i32) -> (i32, i32) {
    %c0_i32 = arith.constant 0 : i32
    %c0_i32_0 = arith.constant 0 : i32
    return %arg0, %c0_i32 : i32, i32
  }
}

</mosaic_0001>

<llo_original>
// kernel: multi_headed_attention.1
$region0: #{multi_headed_attention.1}
  #allocation0 [shape = 'u32[]', space=smem, size = 0x4, offset = 0x4, fixed_abs, tag = 'smem constant byte address 0x4 - core index']
  #allocation1 [shape = 'u32[144,128]{1,0:T(1,128)}', space=vmem, size = 0x12000, scoped, tag = 'internal scratch']
  %s0 = inlined_call_operand.hbm [shape: f32[16,32], index: 0, kind: input, shape index: {}]
  %s1 = inlined_call_operand.hbm [shape: bf16[32,128], index: 1, kind: input, shape index: {}]
  %s2 = inlined_call_operand.vmem [shape: f32[1,128], index: 2, kind: input, shape index: {}]
  %s3 = inlined_call_operand.vmem [shape: bf16[32,128], index: 3, kind: input, shape index: {}]
  %s4 = inlined_call_operand.vmem [shape: f32[1,128], index: 4, kind: input, shape index: {}]
  %s5 = inlined_call_operand.vmem [shape: f32[16,128], index: 5, kind: output, shape index: {}]
  %s6 = sld [smem:[#allocation0]]
  $region61: #{multi_headed_attention.1} parent=0
    _
  %s8 = ssub.s32 1, %s6
  %s9 = scalar_select 0, %s8, %s6
  $region1: #{multi_headed_attention.1} parent=0
    #allocation2 [shape = 'u8[8192]{0}', space=vmem, size = 0x2000, scoped, tag = 'input window, operand 0']
    #allocation3 [shape = 's32[2]{0}', space=sflag, size = 0x8, scoped, tag = 'scoped memory for multi_headed_attention.1']
    #allocation4 [shape = 'u8[8192]{0}', space=vmem, size = 0x2000, scoped, tag = 'input window, operand 1, single buffered']
    #allocation5 [shape = 's32[1]{0}', space=sflag, size = 0x4, scoped, tag = 'scoped memory for multi_headed_attention.1']
    %10 = vsyncpa [#allocation3], 0
    %s11 = scalar_lea.sflag [#allocation3], 1
    %12 = vsyncpa %s11, 0
    %13 = vsyncpa [#allocation5], 0
    loop: start=0, step=1, limit=4
    $region2: #{multi_headed_attention.1} parent=1 // loop_pre_header
      _
    $region3: #{multi_headed_attention.1} parent=1 // loop_header
      %s15 = sphi 0, %s19
      %p16 = scmp.ge.s32.totalorder %s15, 4
      %s25 = sphi 0, %s27
      %s28 = sphi 0, %s25
      %s29 = sphi 0, %s28
      %s45 = sphi 0, %s29
      %s49 = sphi 0, %s49
      %s51 = sphi 0, %s49
      %s52 = sphi 0, %s51
      %s66 = sphi 0, %s52
      %s70 = sphi 0, %s70
      %s72 = sphi 0, %s70
      %s73 = sphi 0, %s72
      %s87 = sphi 0, %s73
      %s91 = sphi 0, %s91
      %s93 = sphi 0, %s91
      %s94 = sphi 0, %s93
      %s108 = sphi 0, %s94
      %s112 = sphi 0, %s112
      %s114 = sphi 0, %s112
      %s115 = sphi 0, %s114
      %s129 = sphi 0, %s115
      %s135 = sphi 0, %s137
      %s138 = sphi 0, %s135
      %s139 = sphi 0, %s138
      %s155 = sphi 0, %s139
    $region4: #{multi_headed_attention.1} parent=1 // loop_header_branch
      %18 = sbr.rel (%p16) target = $region8
    $region5: #{multi_headed_attention.1} parent=1 // loop_body
      %s20 = ssub.s32 %s15, 1
      %s21 = ssub.s32 %s15, 2
      %s22 = sadd.s32 %s15, 1
      %s23 = ssub.s32 %s15, %s22
      %p24 = scmp.eq.s32.totalorder %s23, 0
      %s26 = sadd.s32 %s25, 1
      %s27 = scalar_select %p24, %s25, %s26
      %p30 = pneg %p24
      %p31 = scmp.eq.s32.totalorder %s15, 1
      %p32 = por %p30, %p31
      %p33 = scmp.ne.s32.totalorder %s25, %s28
      %p34 = scmp.eq.s32.totalorder %s15, 0
      %p35 = por %p33, %p34
      %p36 = scmp.ne.s32.totalorder %s25, %s28
      %p37 = scmp.eq.s32.totalorder %s20, 1
      %p38 = por %p36, %p37
      %p39 = scmp.ne.s32.totalorder %s28, %s29
      %p40 = scmp.eq.s32.totalorder %s20, 0
      %p41 = por %p39, %p40
      %p42 = scmp.ne.s32.totalorder %s28, %s29
      %p43 = scmp.eq.s32.totalorder %s21, 1
      %p44 = por %p42, %p43
      %p46 = scmp.ne.s32.totalorder %s29, %s45
      %p47 = scmp.eq.s32.totalorder %s21, 0
      %p48 = por %p46, %p47
      %s50 = sadd.s32 %s49, 1
      %p53 = scmp.eq.s32.totalorder %s15, 1
      %p54 = scmp.ne.s32.totalorder %s49, %s51
      %p55 = scmp.eq.s32.totalorder %s15, 0
      %p56 = por %p54, %p55
      %p57 = scmp.ne.s32.totalorder %s49, %s51
      %p58 = scmp.eq.s32.totalorder %s20, 1
      %p59 = por %p57, %p58
      %p60 = scmp.ne.s32.totalorder %s51, %s52
      %p61 = scmp.eq.s32.totalorder %s20, 0
      %p62 = por %p60, %p61
      %p63 = scmp.ne.s32.totalorder %s51, %s52
      %p64 = scmp.eq.s32.totalorder %s21, 1
      %p65 = por %p63, %p64
      %p67 = scmp.ne.s32.totalorder %s52, %s66
      %p68 = scmp.eq.s32.totalorder %s21, 0
      %p69 = por %p67, %p68
      %s71 = sadd.s32 %s70, 1
      %p74 = scmp.eq.s32.totalorder %s15, 1
      %p75 = scmp.ne.s32.totalorder %s70, %s72
      %p76 = scmp.eq.s32.totalorder %s15, 0
      %p77 = por %p75, %p76
      %p78 = scmp.ne.s32.totalorder %s70, %s72
      %p79 = scmp.eq.s32.totalorder %s20, 1
      %p80 = por %p78, %p79
      %p81 = scmp.ne.s32.totalorder %s72, %s73
      %p82 = scmp.eq.s32.totalorder %s20, 0
      %p83 = por %p81, %p82
      %p84 = scmp.ne.s32.totalorder %s72, %s73
      %p85 = scmp.eq.s32.totalorder %s21, 1
      %p86 = por %p84, %p85
      %p88 = scmp.ne.s32.totalorder %s73, %s87
      %p89 = scmp.eq.s32.totalorder %s21, 0
      %p90 = por %p88, %p89
      %s92 = sadd.s32 %s91, 1
      %p95 = scmp.eq.s32.totalorder %s15, 1
      %p96 = scmp.ne.s32.totalorder %s91, %s93
      %p97 = scmp.eq.s32.totalorder %s15, 0
      %p98 = por %p96, %p97
      %p99 = scmp.ne.s32.totalorder %s91, %s93
      %p100 = scmp.eq.s32.totalorder %s20, 1
      %p101 = por %p99, %p100
      %p102 = scmp.ne.s32.totalorder %s93, %s94
      %p103 = scmp.eq.s32.totalorder %s20, 0
      %p104 = por %p102, %p103
      %p105 = scmp.ne.s32.totalorder %s93, %s94
      %p106 = scmp.eq.s32.totalorder %s21, 1
      %p107 = por %p105, %p106
      %p109 = scmp.ne.s32.totalorder %s94, %s108
      %p110 = scmp.eq.s32.totalorder %s21, 0
      %p111 = por %p109, %p110
      %s113 = sadd.s32 %s112, 1
      %p116 = scmp.eq.s32.totalorder %s15, 1
      %p117 = scmp.ne.s32.totalorder %s112, %s114
      %p118 = scmp.eq.s32.totalorder %s15, 0
      %p119 = por %p117, %p118
      %p120 = scmp.ne.s32.totalorder %s112, %s114
      %p121 = scmp.eq.s32.totalorder %s20, 1
      %p122 = por %p120, %p121
      %p123 = scmp.ne.s32.totalorder %s114, %s115
      %p124 = scmp.eq.s32.totalorder %s20, 0
      %p125 = por %p123, %p124
      %p126 = scmp.ne.s32.totalorder %s114, %s115
      %p127 = scmp.eq.s32.totalorder %s21, 1
      %p128 = por %p126, %p127
      %p130 = scmp.ne.s32.totalorder %s115, %s129
      %p131 = scmp.eq.s32.totalorder %s21, 0
      %p132 = por %p130, %p131
      %s133 = ssub.s32 %s15, %s22
      %p134 = scmp.eq.s32.totalorder %s133, 0
      %s136 = sadd.s32 %s135, 1
      %s137 = scalar_select %p134, %s135, %s136
      %p140 = pneg %p134
      %p141 = scmp.eq.s32.totalorder %s15, 1
      %p142 = por %p140, %p141
      %p143 = scmp.ne.s32.totalorder %s135, %s138
      %p144 = scmp.eq.s32.totalorder %s15, 0
      %p145 = por %p143, %p144
      %p146 = scmp.ne.s32.totalorder %s135, %s138
      %p147 = scmp.eq.s32.totalorder %s20, 1
      %p148 = por %p146, %p147
      %p149 = scmp.ne.s32.totalorder %s138, %s139
      %p150 = scmp.eq.s32.totalorder %s20, 0
      %p151 = por %p149, %p150
      %p152 = scmp.ne.s32.totalorder %s138, %s139
      %p153 = scmp.eq.s32.totalorder %s21, 1
      %p154 = por %p152, %p153
      %p156 = scmp.ne.s32.totalorder %s139, %s155
      %p157 = scmp.eq.s32.totalorder %s21, 0
      %p158 = por %p156, %p157
      %p159 = scmp.le.s32.totalorder 1, %s15
      %p160 = scmp.lt.s32.totalorder %s15, 3
      %p161 = pnand %p159, %p160
      %p162 = pneg %p161
      // Predicated region
      $region9: #{multi_headed_attention.1} parent=5 // pred_check
        _
      $region10: #{multi_headed_attention.1} parent=5 // pred_check_branch
        %164 = sbr.rel (%p161) target = $region12
      $region11: #{multi_headed_attention.1} parent=5 // pred_region
        %s165 = ssub.s32 %s15, 1
        // Predicated region
        $region13: #{multi_headed_attention.1} parent=11 // pred_check
          %p166 = pneg %p62
        $region14: #{multi_headed_attention.1} parent=11 // pred_check_branch
          %168 = sbr.rel (%p166) target = $region16
        $region15: #{multi_headed_attention.1} parent=11 // pred_region
          %s170 = ssub.s32 256, 256
          %171 = vsyncadd [#allocation5], %s170
          %s172 = sshll.u32 [#allocation4], 4
          %s173 = int_to_ptr.vmem [resolvable:$true] %s172
          %178 = dma.hbm_to_vmem [thread:$0]  %s1, 256, %s173, [#allocation5], 64, 64, 4
        $region16: #{multi_headed_attention.1} parent=11 // pred_fallthru
          _
        // Predicated region
        $region17: #{multi_headed_attention.1} parent=11 // pred_check
          %p179 = pneg %p83
        $region18: #{multi_headed_attention.1} parent=11 // pred_check_branch
          %181 = sbr.rel (%p179) target = $region20
        $region19: #{multi_headed_attention.1} parent=11 // pred_region
          _
        $region20: #{multi_headed_attention.1} parent=11 // pred_fallthru
          _
        // Predicated region
        $region21: #{multi_headed_attention.1} parent=11 // pred_check
          %p182 = pneg %p104
        $region22: #{multi_headed_attention.1} parent=11 // pred_check_branch
          %184 = sbr.rel (%p182) target = $region24
        $region23: #{multi_headed_attention.1} parent=11 // pred_region
          _
        $region24: #{multi_headed_attention.1} parent=11 // pred_fallthru
          _
        // Predicated region
        $region25: #{multi_headed_attention.1} parent=11 // pred_check
          %p185 = pneg %p125
        $region26: #{multi_headed_attention.1} parent=11 // pred_check_branch
          %187 = sbr.rel (%p185) target = $region28
        $region27: #{multi_headed_attention.1} parent=11 // pred_region
          _
        $region28: #{multi_headed_attention.1} parent=11 // pred_fallthru
          _
      $region12: #{multi_headed_attention.1} parent=5 // pred_fallthru
        _
      %p188 = scmp.lt.s32.totalorder %s15, 2
      // Predicated region
      $region29: #{multi_headed_attention.1} parent=5 // pred_check
        %p189 = pneg %p188
      $region30: #{multi_headed_attention.1} parent=5 // pred_check_branch
        %191 = sbr.rel (%p189) target = $region32
      $region31: #{multi_headed_attention.1} parent=5 // pred_region
        // Predicated region
        $region33: #{multi_headed_attention.1} parent=31 // pred_check
          %p192 = pneg %p35
        $region34: #{multi_headed_attention.1} parent=31 // pred_check_branch
          %194 = sbr.rel (%p192) target = $region36
        $region35: #{multi_headed_attention.1} parent=31 // pred_region
          %s195 = sand.u32 %s25, 1
          %s196 = scalar_lea.sflag [#allocation3], %s195
          %s197 = sand.u32 %s25, 1
          %s198 = smul.addr %s197, 8
          %s199 = scalar_lea.vmem [#allocation2], %s198
          %s201 = ssub.s32 128, 128
          %202 = vsyncadd %s196, %s201
          %s203 = smul.addr %s15, 128
          %s204 = scalar_lea.hbm %s0, %s203
          %s206 = sshll.u32 %s199, 4
          %s207 = int_to_ptr.vmem [resolvable:$true] %s206
          %209 = dma.hbm_to_vmem [thread:$0]  %s204, 128, %s207, %s196
        $region36: #{multi_headed_attention.1} parent=31 // pred_fallthru
          _
      $region32: #{multi_headed_attention.1} parent=5 // pred_fallthru
        _
      %p210 = scmp.le.s32.totalorder 1, %s15
      %p211 = scmp.lt.s32.totalorder %s15, 3
      %p212 = pnand %p210, %p211
      %p213 = pneg %p212
      // Predicated region
      $region37: #{multi_headed_attention.1} parent=5 // pred_check
        _
      $region38: #{multi_headed_attention.1} parent=5 // pred_check_branch
        %215 = sbr.rel (%p212) target = $region40
      $region39: #{multi_headed_attention.1} parent=5 // pred_region
        %s216 = ssub.s32 %s15, 1
        %s217 = sand.u32 %s28, 1
        %s218 = scalar_lea.sflag [#allocation3], %s217
        %s219 = sand.u32 %s28, 1
        %s220 = smul.addr %s219, 8
        %s221 = scalar_lea.vmem [#allocation2], %s220
        // Predicated region
        $region41: #{multi_headed_attention.1} parent=39 // pred_check
          %p222 = pneg %p41
        $region42: #{multi_headed_attention.1} parent=39 // pred_check_branch
          %224 = sbr.rel (%p222) target = $region44
        $region43: #{multi_headed_attention.1} parent=39 // pred_region
          %225 = dma.done %s218, 128
        $region44: #{multi_headed_attention.1} parent=39 // pred_fallthru
          _
        // Predicated region
        $region45: #{multi_headed_attention.1} parent=39 // pred_check
          %p226 = pneg %p62
        $region46: #{multi_headed_attention.1} parent=39 // pred_check_branch
          %228 = sbr.rel (%p226) target = $region48
        $region47: #{multi_headed_attention.1} parent=39 // pred_region
          %229 = dma.done [#allocation5], 256
        $region48: #{multi_headed_attention.1} parent=39 // pred_fallthru
          _
        %s230 = sand.u32 %s28, 1
        %s231 = scalar_lea.sflag [#allocation3], %s230
        %s232 = sand.u32 %s28, 1
        %s233 = smul.addr %s232, 8
        %s234 = scalar_lea.vmem [#allocation2], %s233
        %p235 = pneg %p41
        %p236 = pneg %p38
        %p237 = pneg %p62
        %p238 = pneg %p59
        %p239 = pneg %p83
        %p240 = pneg %p80
        %p241 = pneg %p104
        %p242 = pneg %p101
        %p243 = pneg %p125
        %p244 = pneg %p122
        %p245 = pneg %p151
        %p246 = pneg %p148
        %p247 = scmp.lt.s32.totalorder %s20, 1
        %s248 = scalar_select %p247, %s20, 1
        %s249 = smul.addr %s248, 8
        %s250 = scalar_lea.vmem %s5, %s249
        %p251 = scmp.lt.s32.totalorder %s20, 1
        %s252 = scalar_select %p251, %s20, 1
        %s253 = smul.addr %s252, 8
        %s254 = scalar_lea.vmem %s5, %s253
        %v256 = vld [vmem:[%s221] sm:$0xff]
        %v257 = vpack.c.bf16 %v256, %v256
        %v258 = vld [vmem:[#allocation4] sm:$0xf]
        %v259 = vld [vmem:[#allocation4 + $0x4] sm:$0xf]
        %v260 = vld [vmem:[#allocation4 + $0x8] sm:$0xf]
        %v261 = vld [vmem:[#allocation4 + $0xc] sm:$0xf]
        %v262 = vld [vmem:[%s2] sm:$0x1]
        %v264 = vlaneseq
        %v265 = vshrl.u32 %v264, 7
        %v266 = vsub.s32 0, %v265
        %v267 = vrot.slane %v262, %v266
        %v273 = vunpack.c.l.b16 %v258
        %v274 = vunpack.c.l.b16 %v259
        %v275 = vunpack.c.l.b16 %v260
        %v276 = vunpack.c.l.b16 %v261
        %v277 = vpack.c.b16 %v274, %v273
        %v278 = vpack.c.b16 %v276, %v275
        %vm281 = vcmask 261120
        %v283 = vsel %vm281, %v257, 0
        %285 = vmatprep.subr.bf16.mxu0 0
        %286 = vmatpush1.bf16.msra.mxu0 %v277
        %287 = vmatprep.subr.bf16.mxu0 0
        %288 = vmatpush1.bf16.msra.mxu0 %v278
        %289 = vmatprep.subr.bf16.mxu0 0
        %290 = vmatpush1.bf16.msra.mxu0 0
        %291 = vmatprep.subr.bf16.mxu0 0
        %292 = vmatpush1.bf16.msra.mxu0 0
        %293 = vmatprep.subr.bf16.mxu0 0
        %294 = vmatpush1.bf16.msra.mxu0 0
        %295 = vmatprep.subr.bf16.mxu0 0
        %296 = vmatpush1.bf16.msra.mxu0 0
        %297 = vmatprep.subr.bf16.mxu0 0
        %298 = vmatpush1.bf16.msra.mxu0 0
        %299 = vmatprep.subr.bf16.mxu0 0
        %300 = vmatpush1.bf16.msra.mxu0 0
        %301 = vmatprep.subr.bf16.mxu0 0
        %302 = vmatpush1.bf16.msra.mxu0 0
        %303 = vmatprep.subr.bf16.mxu0 0
        %304 = vmatpush1.bf16.msra.mxu0 0
        %305 = vmatprep.subr.bf16.mxu0 0
        %306 = vmatpush1.bf16.msra.mxu0 0
        %307 = vmatprep.subr.bf16.mxu0 0
        %308 = vmatpush1.bf16.msra.mxu0 0
        %309 = vmatprep.subr.bf16.mxu0 0
        %310 = vmatpush1.bf16.msra.mxu0 0
        %311 = vmatprep.subr.bf16.mxu0 0
        %312 = vmatpush1.bf16.msra.mxu0 0
        %313 = vmatprep.subr.bf16.mxu0 0
        %314 = vmatpush1.bf16.msra.mxu0 0
        %315 = vmatprep.subr.bf16.mxu0 0
        %316 = vmatpush1.bf16.msra.mxu0 0
        %317 = vmatprep.mubr.bf16.mxu0 0
        %318 = vmatmul.mubr.bf16.gmra.mrb[0].mxu0 %v283
        %v319 = vpop.f32.mrb[0].mxu0
        %v320 = vadd.f32 %v267, %v319
        %v321 = vpop.f32.mrb[0].mxu0
        %v322 = vpop.f32.mrb[0].mxu0
        %v323 = vpop.f32.mrb[0].mxu0
        %324 = vdwg.mxu0
        %326 = vrot.lane.b32.xlu0 %v320, 120
        %v327 = vpop.permute.xlu0 %326
        %329 = vrot.lane.b32.xlu0 %v320, 112
        %v330 = vpop.permute.xlu0 %329
        %332 = vrot.lane.b32.xlu0 %v320, 104
        %v333 = vpop.permute.xlu0 %332
        %v335 = vcombine.low %v320, %v330
        %v336 = vcombine.high %v320, %v330
        %v338 = vunpack.c.l.s4 1983009808
        %v339 = vunpack.c.0.s8 %v338
        %v340 = vlaneseq
        %v341 = vshrl.u32 %v340, 7
        %v342 = vsub.s32 %v339, %v341
        %v343 = vrot.slane %v335, %v342
        %v345 = vunpack.c.l.s4 1983009808
        %v346 = vunpack.c.0.s8 %v345
        %v347 = vlaneseq
        %v348 = vshrl.u32 %v347, 7
        %v349 = vsub.s32 %v346, %v348
        %v350 = vrot.slane %v336, %v349
        %v351 = vcombine.low %v327, %v333
        %v352 = vcombine.high %v327, %v333
        %v354 = vunpack.c.l.s4 1983009808
        %v355 = vunpack.c.0.s8 %v354
        %v356 = vlaneseq
        %v357 = vshrl.u32 %v356, 7
        %v358 = vsub.s32 %v355, %v357
        %v359 = vrot.slane %v351, %v358
        %v361 = vunpack.c.l.s4 1983009808
        %v362 = vunpack.c.0.s8 %v361
        %v363 = vlaneseq
        %v364 = vshrl.u32 %v363, 7
        %v365 = vsub.s32 %v362, %v364
        %v366 = vrot.slane %v352, %v365
        %v367 = vcombine.low %v343, %v359
        %v368 = vcombine.high %v343, %v359
        %v370 = vunpack.c.l.s4 1934713408
        %v371 = vunpack.c.0.s8 %v370
        %v372 = vlaneseq
        %v373 = vshrl.u32 %v372, 7
        %v374 = vsub.s32 %v371, %v373
        %v375 = vrot.slane %v367, %v374
        %v377 = vunpack.c.l.s4 1934713408
        %v378 = vunpack.c.0.s8 %v377
        %v379 = vlaneseq
        %v380 = vshrl.u32 %v379, 7
        %v381 = vsub.s32 %v378, %v380
        %v382 = vrot.slane %v368, %v381
        %v383 = vcombine.low %v350, %v366
        %v384 = vcombine.high %v350, %v366
        %v386 = vunpack.c.l.s4 1934713408
        %v387 = vunpack.c.0.s8 %v386
        %v388 = vlaneseq
        %v389 = vshrl.u32 %v388, 7
        %v390 = vsub.s32 %v387, %v389
        %v391 = vrot.slane %v383, %v390
        %v393 = vunpack.c.l.s4 1934713408
        %v394 = vunpack.c.0.s8 %v393
        %v395 = vlaneseq
        %v396 = vshrl.u32 %v395, 7
        %v397 = vsub.s32 %v394, %v396
        %v398 = vrot.slane %v384, %v397
        %v399 = vcombine.high %v375, 0.0
        %v400 = vcombine.high %v382, 0.0
        %v401 = vcombine.high %v391, 0.0
        %v402 = vcombine.high %v398, 0.0
        %v403 = vcombine.low %v375, %v382
        %v405 = vunpack.c.l.s4 1983009808
        %v406 = vunpack.c.0.s8 %v405
        %v407 = vlaneseq
        %v408 = vshrl.u32 %v407, 7
        %v409 = vsub.s32 %v406, %v408
        %v410 = vrot.slane %v403, %v409
        %v411 = vcombine.low %v399, %v400
        %v413 = vunpack.c.l.s4 1983009808
        %v414 = vunpack.c.0.s8 %v413
        %v415 = vlaneseq
        %v416 = vshrl.u32 %v415, 7
        %v417 = vsub.s32 %v414, %v416
        %v418 = vrot.slane %v411, %v417
        %v419 = vcombine.low %v391, %v398
        %v421 = vunpack.c.l.s4 1983009808
        %v422 = vunpack.c.0.s8 %v421
        %v423 = vlaneseq
        %v424 = vshrl.u32 %v423, 7
        %v425 = vsub.s32 %v422, %v424
        %v426 = vrot.slane %v419, %v425
        %v427 = vcombine.low %v401, %v402
        %v429 = vunpack.c.l.s4 1983009808
        %v430 = vunpack.c.0.s8 %v429
        %v431 = vlaneseq
        %v432 = vshrl.u32 %v431, 7
        %v433 = vsub.s32 %v430, %v432
        %v434 = vrot.slane %v427, %v433
        %v435 = vcombine.low %v410, %v418
        %v436 = vcombine.high %v410, %v418
        %v438 = vunpack.c.l.s4 1934713408
        %v439 = vunpack.c.0.s8 %v438
        %v440 = vlaneseq
        %v441 = vshrl.u32 %v440, 7
        %v442 = vsub.s32 %v439, %v441
        %v443 = vrot.slane %v435, %v442
        %v445 = vunpack.c.l.s4 1934713408
        %v446 = vunpack.c.0.s8 %v445
        %v447 = vlaneseq
        %v448 = vshrl.u32 %v447, 7
        %v449 = vsub.s32 %v446, %v448
        %v450 = vrot.slane %v436, %v449
        %v451 = vcombine.low %v426, %v434
        %v452 = vcombine.high %v426, %v434
        %v454 = vunpack.c.l.s4 1934713408
        %v455 = vunpack.c.0.s8 %v454
        %v456 = vlaneseq
        %v457 = vshrl.u32 %v456, 7
        %v458 = vsub.s32 %v455, %v457
        %v459 = vrot.slane %v451, %v458
        %v461 = vunpack.c.l.s4 1934713408
        %v462 = vunpack.c.0.s8 %v461
        %v463 = vlaneseq
        %v464 = vshrl.u32 %v463, 7
        %v465 = vsub.s32 %v462, %v464
        %v466 = vrot.slane %v452, %v465
        %v467 = vcombine.low %v443, %v459
        %v468 = vcombine.high %v443, %v459
        %v469 = vcombine.low %v450, %v466
        %v470 = vcombine.high %v450, %v466
        %471 = vrot.lane.b32.xlu0 %v320, 96
        %v472 = vpop.permute.xlu0 %471
        %473 = vrot.lane.b32.xlu0 %v327, 96
        %v474 = vpop.permute.xlu0 %473
        %475 = vrot.lane.b32.xlu0 %v330, 96
        %v476 = vpop.permute.xlu0 %475
        %477 = vrot.lane.b32.xlu0 %v333, 96
        %v478 = vpop.permute.xlu0 %477
        %v483 = vcombine.low %v472, %v476
        %v484 = vcombine.high %v472, %v476
        %v486 = vunpack.c.l.s4 1983009808
        %v487 = vunpack.c.0.s8 %v486
        %v488 = vlaneseq
        %v489 = vshrl.u32 %v488, 7
        %v490 = vsub.s32 %v487, %v489
        %v491 = vrot.slane %v483, %v490
        %v493 = vunpack.c.l.s4 1983009808
        %v494 = vunpack.c.0.s8 %v493
        %v495 = vlaneseq
        %v496 = vshrl.u32 %v495, 7
        %v497 = vsub.s32 %v494, %v496
        %v498 = vrot.slane %v484, %v497
        %v499 = vcombine.low %v474, %v478
        %v500 = vcombine.high %v474, %v478
        %v502 = vunpack.c.l.s4 1983009808
        %v503 = vunpack.c.0.s8 %v502
        %v504 = vlaneseq
        %v505 = vshrl.u32 %v504, 7
        %v506 = vsub.s32 %v503, %v505
        %v507 = vrot.slane %v499, %v506
        %v509 = vunpack.c.l.s4 1983009808
        %v510 = vunpack.c.0.s8 %v509
        %v511 = vlaneseq
        %v512 = vshrl.u32 %v511, 7
        %v513 = vsub.s32 %v510, %v512
        %v514 = vrot.slane %v500, %v513
        %v515 = vcombine.low %v491, %v507
        %v516 = vcombine.high %v491, %v507
        %v518 = vunpack.c.l.s4 1934713408
        %v519 = vunpack.c.0.s8 %v518
        %v520 = vlaneseq
        %v521 = vshrl.u32 %v520, 7
        %v522 = vsub.s32 %v519, %v521
        %v523 = vrot.slane %v515, %v522
        %v525 = vunpack.c.l.s4 1934713408
        %v526 = vunpack.c.0.s8 %v525
        %v527 = vlaneseq
        %v528 = vshrl.u32 %v527, 7
        %v529 = vsub.s32 %v526, %v528
        %v530 = vrot.slane %v516, %v529
        %v531 = vcombine.low %v498, %v514
        %v532 = vcombine.high %v498, %v514
        %v534 = vunpack.c.l.s4 1934713408
        %v535 = vunpack.c.0.s8 %v534
        %v536 = vlaneseq
        %v537 = vshrl.u32 %v536, 7
        %v538 = vsub.s32 %v535, %v537
        %v539 = vrot.slane %v531, %v538
        %v541 = vunpack.c.l.s4 1934713408
        %v542 = vunpack.c.0.s8 %v541
        %v543 = vlaneseq
        %v544 = vshrl.u32 %v543, 7
        %v545 = vsub.s32 %v542, %v544
        %v546 = vrot.slane %v532, %v545
        %v547 = vcombine.high %v523, 0.0
        %v548 = vcombine.high %v530, 0.0
        %v549 = vcombine.high %v539, 0.0
        %v550 = vcombine.high %v546, 0.0
        %v551 = vcombine.low %v523, %v530
        %v553 = vunpack.c.l.s4 1983009808
        %v554 = vunpack.c.0.s8 %v553
        %v555 = vlaneseq
        %v556 = vshrl.u32 %v555, 7
        %v557 = vsub.s32 %v554, %v556
        %v558 = vrot.slane %v551, %v557
        %v559 = vcombine.low %v547, %v548
        %v561 = vunpack.c.l.s4 1983009808
        %v562 = vunpack.c.0.s8 %v561
        %v563 = vlaneseq
        %v564 = vshrl.u32 %v563, 7
        %v565 = vsub.s32 %v562, %v564
        %v566 = vrot.slane %v559, %v565
        %v567 = vcombine.low %v539, %v546
        %v569 = vunpack.c.l.s4 1983009808
        %v570 = vunpack.c.0.s8 %v569
        %v571 = vlaneseq
        %v572 = vshrl.u32 %v571, 7
        %v573 = vsub.s32 %v570, %v572
        %v574 = vrot.slane %v567, %v573
        %v575 = vcombine.low %v549, %v550
        %v577 = vunpack.c.l.s4 1983009808
        %v578 = vunpack.c.0.s8 %v577
        %v579 = vlaneseq
        %v580 = vshrl.u32 %v579, 7
        %v581 = vsub.s32 %v578, %v580
        %v582 = vrot.slane %v575, %v581
        %v583 = vcombine.low %v558, %v566
        %v584 = vcombine.high %v558, %v566
        %v586 = vunpack.c.l.s4 1934713408
        %v587 = vunpack.c.0.s8 %v586
        %v588 = vlaneseq
        %v589 = vshrl.u32 %v588, 7
        %v590 = vsub.s32 %v587, %v589
        %v591 = vrot.slane %v583, %v590
        %v593 = vunpack.c.l.s4 1934713408
        %v594 = vunpack.c.0.s8 %v593
        %v595 = vlaneseq
        %v596 = vshrl.u32 %v595, 7
        %v597 = vsub.s32 %v594, %v596
        %v598 = vrot.slane %v584, %v597
        %v599 = vcombine.low %v574, %v582
        %v600 = vcombine.high %v574, %v582
        %v602 = vunpack.c.l.s4 1934713408
        %v603 = vunpack.c.0.s8 %v602
        %v604 = vlaneseq
        %v605 = vshrl.u32 %v604, 7
        %v606 = vsub.s32 %v603, %v605
        %v607 = vrot.slane %v599, %v606
        %v609 = vunpack.c.l.s4 1934713408
        %v610 = vunpack.c.0.s8 %v609
        %v611 = vlaneseq
        %v612 = vshrl.u32 %v611, 7
        %v613 = vsub.s32 %v610, %v612
        %v614 = vrot.slane %v600, %v613
        %v615 = vcombine.low %v591, %v607
        %v616 = vcombine.high %v591, %v607
        %v617 = vcombine.low %v598, %v614
        %v618 = vcombine.high %v598, %v614
        %619 = vrot.lane.b32.xlu0 %v320, 64
        %v620 = vpop.permute.xlu0 %619
        %621 = vrot.lane.b32.xlu0 %v327, 64
        %v622 = vpop.permute.xlu0 %621
        %623 = vrot.lane.b32.xlu0 %v330, 64
        %v624 = vpop.permute.xlu0 %623
        %625 = vrot.lane.b32.xlu0 %v333, 64
        %v626 = vpop.permute.xlu0 %625
        %v631 = vcombine.low %v620, %v624
        %v632 = vcombine.high %v620, %v624
        %v634 = vunpack.c.l.s4 1983009808
        %v635 = vunpack.c.0.s8 %v634
        %v636 = vlaneseq
        %v637 = vshrl.u32 %v636, 7
        %v638 = vsub.s32 %v635, %v637
        %v639 = vrot.slane %v631, %v638
        %v641 = vunpack.c.l.s4 1983009808
        %v642 = vunpack.c.0.s8 %v641
        %v643 = vlaneseq
        %v644 = vshrl.u32 %v643, 7
        %v645 = vsub.s32 %v642, %v644
        %v646 = vrot.slane %v632, %v645
        %v647 = vcombine.low %v622, %v626
        %v648 = vcombine.high %v622, %v626
        %v650 = vunpack.c.l.s4 1983009808
        %v651 = vunpack.c.0.s8 %v650
        %v652 = vlaneseq
        %v653 = vshrl.u32 %v652, 7
        %v654 = vsub.s32 %v651, %v653
        %v655 = vrot.slane %v647, %v654
        %v657 = vunpack.c.l.s4 1983009808
        %v658 = vunpack.c.0.s8 %v657
        %v659 = vlaneseq
        %v660 = vshrl.u32 %v659, 7
        %v661 = vsub.s32 %v658, %v660
        %v662 = vrot.slane %v648, %v661
        %v663 = vcombine.low %v639, %v655
        %v664 = vcombine.high %v639, %v655
        %v666 = vunpack.c.l.s4 1934713408
        %v667 = vunpack.c.0.s8 %v666
        %v668 = vlaneseq
        %v669 = vshrl.u32 %v668, 7
        %v670 = vsub.s32 %v667, %v669
        %v671 = vrot.slane %v663, %v670
        %v673 = vunpack.c.l.s4 1934713408
        %v674 = vunpack.c.0.s8 %v673
        %v675 = vlaneseq
        %v676 = vshrl.u32 %v675, 7
        %v677 = vsub.s32 %v674, %v676
        %v678 = vrot.slane %v664, %v677
        %v679 = vcombine.low %v646, %v662
        %v680 = vcombine.high %v646, %v662
        %v682 = vunpack.c.l.s4 1934713408
        %v683 = vunpack.c.0.s8 %v682
        %v684 = vlaneseq
        %v685 = vshrl.u32 %v684, 7
        %v686 = vsub.s32 %v683, %v685
        %v687 = vrot.slane %v679, %v686
        %v689 = vunpack.c.l.s4 1934713408
        %v690 = vunpack.c.0.s8 %v689
        %v691 = vlaneseq
        %v692 = vshrl.u32 %v691, 7
        %v693 = vsub.s32 %v690, %v692
        %v694 = vrot.slane %v680, %v693
        %v695 = vcombine.high %v671, 0.0
        %v696 = vcombine.high %v678, 0.0
        %v697 = vcombine.high %v687, 0.0
        %v698 = vcombine.high %v694, 0.0
        %v699 = vcombine.low %v671, %v678
        %v701 = vunpack.c.l.s4 1983009808
        %v702 = vunpack.c.0.s8 %v701
        %v703 = vlaneseq
        %v704 = vshrl.u32 %v703, 7
        %v705 = vsub.s32 %v702, %v704
        %v706 = vrot.slane %v699, %v705
        %v707 = vcombine.low %v695, %v696
        %v709 = vunpack.c.l.s4 1983009808
        %v710 = vunpack.c.0.s8 %v709
        %v711 = vlaneseq
        %v712 = vshrl.u32 %v711, 7
        %v713 = vsub.s32 %v710, %v712
        %v714 = vrot.slane %v707, %v713
        %v715 = vcombine.low %v687, %v694
        %v717 = vunpack.c.l.s4 1983009808
        %v718 = vunpack.c.0.s8 %v717
        %v719 = vlaneseq
        %v720 = vshrl.u32 %v719, 7
        %v721 = vsub.s32 %v718, %v720
        %v722 = vrot.slane %v715, %v721
        %v723 = vcombine.low %v697, %v698
        %v725 = vunpack.c.l.s4 1983009808
        %v726 = vunpack.c.0.s8 %v725
        %v727 = vlaneseq
        %v728 = vshrl.u32 %v727, 7
        %v729 = vsub.s32 %v726, %v728
        %v730 = vrot.slane %v723, %v729
        %v731 = vcombine.low %v706, %v714
        %v732 = vcombine.high %v706, %v714
        %v734 = vunpack.c.l.s4 1934713408
        %v735 = vunpack.c.0.s8 %v734
        %v736 = vlaneseq
        %v737 = vshrl.u32 %v736, 7
        %v738 = vsub.s32 %v735, %v737
        %v739 = vrot.slane %v731, %v738
        %v741 = vunpack.c.l.s4 1934713408
        %v742 = vunpack.c.0.s8 %v741
        %v743 = vlaneseq
        %v744 = vshrl.u32 %v743, 7
        %v745 = vsub.s32 %v742, %v744
        %v746 = vrot.slane %v732, %v745
        %v747 = vcombine.low %v722, %v730
        %v748 = vcombine.high %v722, %v730
        %v750 = vunpack.c.l.s4 1934713408
        %v751 = vunpack.c.0.s8 %v750
        %v752 = vlaneseq
        %v753 = vshrl.u32 %v752, 7
        %v754 = vsub.s32 %v751, %v753
        %v755 = vrot.slane %v747, %v754
        %v757 = vunpack.c.l.s4 1934713408
        %v758 = vunpack.c.0.s8 %v757
        %v759 = vlaneseq
        %v760 = vshrl.u32 %v759, 7
        %v761 = vsub.s32 %v758, %v760
        %v762 = vrot.slane %v748, %v761
        %v763 = vcombine.low %v739, %v755
        %v764 = vcombine.high %v739, %v755
        %v765 = vcombine.low %v746, %v762
        %v766 = vcombine.high %v746, %v762
        %vm767 = vcmask 64512
        %v769 = vsel %vm767, %v467, 0
        %v772 = vsel %vm767, %v615, 0
        %774 = vmatprep.subr.mxu0 0.0
        %775 = vmatpush1.xpose.msra.mxu0 %v772
        %776 = vmatprep.subr.mxu0 0.0
        %777 = vmatpush1.xpose.msra.mxu0 0.0
        %778 = vmatprep.subr.mxu0 0.0
        %779 = vmatpush1.xpose.msra.mxu0 0.0
        %780 = vmatprep.subr.mxu0 0.0
        %781 = vmatpush1.xpose.msra.mxu0 0.0
        %782 = vmatprep.subr.mxu0 0.0
        %783 = vmatpush1.xpose.msra.mxu0 0.0
        %784 = vmatprep.subr.mxu0 0.0
        %785 = vmatpush1.xpose.msra.mxu0 0.0
        %786 = vmatprep.subr.mxu0 0.0
        %787 = vmatpush1.xpose.msra.mxu0 0.0
        %788 = vmatprep.subr.mxu0 0.0
        %789 = vmatpush1.xpose.msra.mxu0 0.0
        %790 = vmatprep.subr.mxu0 0.0
        %791 = vmatpush1.xpose.msra.mxu0 0.0
        %792 = vmatprep.subr.mxu0 0.0
        %793 = vmatpush1.xpose.msra.mxu0 0.0
        %794 = vmatprep.subr.mxu0 0.0
        %795 = vmatpush1.xpose.msra.mxu0 0.0
        %796 = vmatprep.subr.mxu0 0.0
        %797 = vmatpush1.xpose.msra.mxu0 0.0
        %798 = vmatprep.subr.mxu0 0.0
        %799 = vmatpush1.xpose.msra.mxu0 0.0
        %800 = vmatprep.subr.mxu0 0.0
        %801 = vmatpush1.xpose.msra.mxu0 0.0
        %802 = vmatprep.subr.mxu0 0.0
        %803 = vmatpush1.xpose.msra.mxu0 0.0
        %804 = vmatprep.subr.mxu0 0.0
        %805 = vmatpush1.xpose.msra.mxu0 0.0
        %806 = vmatprep.subr.mxu0 0.0
        %807 = vmatpush1.xpose.msra.mxu0 0.0
        %808 = vmatprep.subr.mxu0 0.0
        %809 = vmatpush1.xpose.msra.mxu0 0.0
        %810 = vmatprep.subr.mxu0 0.0
        %811 = vmatpush1.xpose.msra.mxu0 0.0
        %812 = vmatprep.subr.mxu0 0.0
        %813 = vmatpush1.xpose.msra.mxu0 0.0
        %814 = vmatprep.subr.mxu0 0.0
        %815 = vmatpush1.xpose.msra.mxu0 0.0
        %816 = vmatprep.subr.mxu0 0.0
        %817 = vmatpush1.xpose.msra.mxu0 0.0
        %818 = vmatprep.subr.mxu0 0.0
        %819 = vmatpush1.xpose.msra.mxu0 0.0
        %820 = vmatprep.subr.mxu0 0.0
        %821 = vmatpush1.xpose.msra.mxu0 0.0
        %822 = vmatprep.subr.mxu0 0.0
        %823 = vmatpush1.xpose.msra.mxu0 0.0
        %824 = vmatprep.subr.mxu0 0.0
        %825 = vmatpush1.xpose.msra.mxu0 0.0
        %826 = vmatprep.subr.mxu0 0.0
        %827 = vmatpush1.xpose.msra.mxu0 0.0
        %828 = vmatprep.subr.mxu0 0.0
        %829 = vmatpush1.xpose.msra.mxu0 0.0
        %830 = vmatprep.subr.mxu0 0.0
        %831 = vmatpush1.xpose.msra.mxu0 0.0
        %832 = vmatprep.subr.mxu0 0.0
        %833 = vmatpush1.xpose.msra.mxu0 0.0
        %834 = vmatprep.subr.mxu0 0.0
        %835 = vmatpush1.xpose.msra.mxu0 0.0
        %836 = vmatprep.subr.mxu0 0.0
        %837 = vmatpush1.xpose.msra.mxu0 0.0
        %838 = vmatprep.mubr.f32.mxu0 0.0
        %839 = vmatmul.mubr.f32.gmra.mrb[0].mxu0 %v769
        %v840 = vpop.f32.mrb[0].mxu0
        %v841 = vadd.f32 0.0, %v840
        %v842 = vpop.f32.mrb[0].mxu0
        %843 = vdwg.mxu0
        %v845 = vsel %vm767, %v468, 0
        %v848 = vsel %vm767, %v616, 0
        %850 = vmatprep.subr.mxu0 0.0
        %851 = vmatpush1.xpose.msra.mxu0 %v848
        %852 = vmatprep.subr.mxu0 0.0
        %853 = vmatpush1.xpose.msra.mxu0 0.0
        %854 = vmatprep.subr.mxu0 0.0
        %855 = vmatpush1.xpose.msra.mxu0 0.0
        %856 = vmatprep.subr.mxu0 0.0
        %857 = vmatpush1.xpose.msra.mxu0 0.0
        %858 = vmatprep.subr.mxu0 0.0
        %859 = vmatpush1.xpose.msra.mxu0 0.0
        %860 = vmatprep.subr.mxu0 0.0
        %861 = vmatpush1.xpose.msra.mxu0 0.0
        %862 = vmatprep.subr.mxu0 0.0
        %863 = vmatpush1.xpose.msra.mxu0 0.0
        %864 = vmatprep.subr.mxu0 0.0
        %865 = vmatpush1.xpose.msra.mxu0 0.0
        %866 = vmatprep.subr.mxu0 0.0
        %867 = vmatpush1.xpose.msra.mxu0 0.0
        %868 = vmatprep.subr.mxu0 0.0
        %869 = vmatpush1.xpose.msra.mxu0 0.0
        %870 = vmatprep.subr.mxu0 0.0
        %871 = vmatpush1.xpose.msra.mxu0 0.0
        %872 = vmatprep.subr.mxu0 0.0
        %873 = vmatpush1.xpose.msra.mxu0 0.0
        %874 = vmatprep.subr.mxu0 0.0
        %875 = vmatpush1.xpose.msra.mxu0 0.0
        %876 = vmatprep.subr.mxu0 0.0
        %877 = vmatpush1.xpose.msra.mxu0 0.0
        %878 = vmatprep.subr.mxu0 0.0
        %879 = vmatpush1.xpose.msra.mxu0 0.0
        %880 = vmatprep.subr.mxu0 0.0
        %881 = vmatpush1.xpose.msra.mxu0 0.0
        %882 = vmatprep.subr.mxu0 0.0
        %883 = vmatpush1.xpose.msra.mxu0 0.0
        %884 = vmatprep.subr.mxu0 0.0
        %885 = vmatpush1.xpose.msra.mxu0 0.0
        %886 = vmatprep.subr.mxu0 0.0
        %887 = vmatpush1.xpose.msra.mxu0 0.0
        %888 = vmatprep.subr.mxu0 0.0
        %889 = vmatpush1.xpose.msra.mxu0 0.0
        %890 = vmatprep.subr.mxu0 0.0
        %891 = vmatpush1.xpose.msra.mxu0 0.0
        %892 = vmatprep.subr.mxu0 0.0
        %893 = vmatpush1.xpose.msra.mxu0 0.0
        %894 = vmatprep.subr.mxu0 0.0
        %895 = vmatpush1.xpose.msra.mxu0 0.0
        %896 = vmatprep.subr.mxu0 0.0
        %897 = vmatpush1.xpose.msra.mxu0 0.0
        %898 = vmatprep.subr.mxu0 0.0
        %899 = vmatpush1.xpose.msra.mxu0 0.0
        %900 = vmatprep.subr.mxu0 0.0
        %901 = vmatpush1.xpose.msra.mxu0 0.0
        %902 = vmatprep.subr.mxu0 0.0
        %903 = vmatpush1.xpose.msra.mxu0 0.0
        %904 = vmatprep.subr.mxu0 0.0
        %905 = vmatpush1.xpose.msra.mxu0 0.0
        %906 = vmatprep.subr.mxu0 0.0
        %907 = vmatpush1.xpose.msra.mxu0 0.0
        %908 = vmatprep.subr.mxu0 0.0
        %909 = vmatpush1.xpose.msra.mxu0 0.0
        %910 = vmatprep.subr.mxu0 0.0
        %911 = vmatpush1.xpose.msra.mxu0 0.0
        %912 = vmatprep.subr.mxu0 0.0
        %913 = vmatpush1.xpose.msra.mxu0 0.0
        %914 = vmatprep.mubr.f32.mxu0 0.0
        %915 = vmatmul.mubr.f32.gmra.mrb[0].mxu0 %v845
        %v916 = vpop.f32.mrb[0].mxu0
        %v917 = vadd.f32 0.0, %v916
        %v918 = vpop.f32.mrb[0].mxu0
        %919 = vdwg.mxu0
        %v921 = vsel %vm767, %v469, 0
        %v924 = vsel %vm767, %v617, 0
        %926 = vmatprep.subr.mxu0 0.0
        %927 = vmatpush1.xpose.msra.mxu0 %v924
        %928 = vmatprep.subr.mxu0 0.0
        %929 = vmatpush1.xpose.msra.mxu0 0.0
        %930 = vmatprep.subr.mxu0 0.0
        %931 = vmatpush1.xpose.msra.mxu0 0.0
        %932 = vmatprep.subr.mxu0 0.0
        %933 = vmatpush1.xpose.msra.mxu0 0.0
        %934 = vmatprep.subr.mxu0 0.0
        %935 = vmatpush1.xpose.msra.mxu0 0.0
        %936 = vmatprep.subr.mxu0 0.0
        %937 = vmatpush1.xpose.msra.mxu0 0.0
        %938 = vmatprep.subr.mxu0 0.0
        %939 = vmatpush1.xpose.msra.mxu0 0.0
        %940 = vmatprep.subr.mxu0 0.0
        %941 = vmatpush1.xpose.msra.mxu0 0.0
        %942 = vmatprep.subr.mxu0 0.0
        %943 = vmatpush1.xpose.msra.mxu0 0.0
        %944 = vmatprep.subr.mxu0 0.0
        %945 = vmatpush1.xpose.msra.mxu0 0.0
        %946 = vmatprep.subr.mxu0 0.0
        %947 = vmatpush1.xpose.msra.mxu0 0.0
        %948 = vmatprep.subr.mxu0 0.0
        %949 = vmatpush1.xpose.msra.mxu0 0.0
        %950 = vmatprep.subr.mxu0 0.0
        %951 = vmatpush1.xpose.msra.mxu0 0.0
        %952 = vmatprep.subr.mxu0 0.0
        %953 = vmatpush1.xpose.msra.mxu0 0.0
        %954 = vmatprep.subr.mxu0 0.0
        %955 = vmatpush1.xpose.msra.mxu0 0.0
        %956 = vmatprep.subr.mxu0 0.0
        %957 = vmatpush1.xpose.msra.mxu0 0.0
        %958 = vmatprep.subr.mxu0 0.0
        %959 = vmatpush1.xpose.msra.mxu0 0.0
        %960 = vmatprep.subr.mxu0 0.0
        %961 = vmatpush1.xpose.msra.mxu0 0.0
        %962 = vmatprep.subr.mxu0 0.0
        %963 = vmatpush1.xpose.msra.mxu0 0.0
        %964 = vmatprep.subr.mxu0 0.0
        %965 = vmatpush1.xpose.msra.mxu0 0.0
        %966 = vmatprep.subr.mxu0 0.0
        %967 = vmatpush1.xpose.msra.mxu0 0.0
        %968 = vmatprep.subr.mxu0 0.0
        %969 = vmatpush1.xpose.msra.mxu0 0.0
        %970 = vmatprep.subr.mxu0 0.0
        %971 = vmatpush1.xpose.msra.mxu0 0.0
        %972 = vmatprep.subr.mxu0 0.0
        %973 = vmatpush1.xpose.msra.mxu0 0.0
        %974 = vmatprep.subr.mxu0 0.0
        %975 = vmatpush1.xpose.msra.mxu0 0.0
        %976 = vmatprep.subr.mxu0 0.0
        %977 = vmatpush1.xpose.msra.mxu0 0.0
        %978 = vmatprep.subr.mxu0 0.0
        %979 = vmatpush1.xpose.msra.mxu0 0.0
        %980 = vmatprep.subr.mxu0 0.0
        %981 = vmatpush1.xpose.msra.mxu0 0.0
        %982 = vmatprep.subr.mxu0 0.0
        %983 = vmatpush1.xpose.msra.mxu0 0.0
        %984 = vmatprep.subr.mxu0 0.0
        %985 = vmatpush1.xpose.msra.mxu0 0.0
        %986 = vmatprep.subr.mxu0 0.0
        %987 = vmatpush1.xpose.msra.mxu0 0.0
        %988 = vmatprep.subr.mxu0 0.0
        %989 = vmatpush1.xpose.msra.mxu0 0.0
        %990 = vmatprep.mubr.f32.mxu0 0.0
        %991 = vmatmul.mubr.f32.gmra.mrb[0].mxu0 %v921
        %v992 = vpop.f32.mrb[0].mxu0
        %v993 = vadd.f32 0.0, %v992
        %v994 = vpop.f32.mrb[0].mxu0
        %995 = vdwg.mxu0
        %v997 = vsel %vm767, %v470, 0
        %v1000 = vsel %vm767, %v618, 0
        %1002 = vmatprep.subr.mxu0 0.0
        %1003 = vmatpush1.xpose.msra.mxu0 %v1000
        %1004 = vmatprep.subr.mxu0 0.0
        %1005 = vmatpush1.xpose.msra.mxu0 0.0
        %1006 = vmatprep.subr.mxu0 0.0
        %1007 = vmatpush1.xpose.msra.mxu0 0.0
        %1008 = vmatprep.subr.mxu0 0.0
        %1009 = vmatpush1.xpose.msra.mxu0 0.0
        %1010 = vmatprep.subr.mxu0 0.0
        %1011 = vmatpush1.xpose.msra.mxu0 0.0
        %1012 = vmatprep.subr.mxu0 0.0
        %1013 = vmatpush1.xpose.msra.mxu0 0.0
        %1014 = vmatprep.subr.mxu0 0.0
        %1015 = vmatpush1.xpose.msra.mxu0 0.0
        %1016 = vmatprep.subr.mxu0 0.0
        %1017 = vmatpush1.xpose.msra.mxu0 0.0
        %1018 = vmatprep.subr.mxu0 0.0
        %1019 = vmatpush1.xpose.msra.mxu0 0.0
        %1020 = vmatprep.subr.mxu0 0.0
        %1021 = vmatpush1.xpose.msra.mxu0 0.0
        %1022 = vmatprep.subr.mxu0 0.0
        %1023 = vmatpush1.xpose.msra.mxu0 0.0
        %1024 = vmatprep.subr.mxu0 0.0
        %1025 = vmatpush1.xpose.msra.mxu0 0.0
        %1026 = vmatprep.subr.mxu0 0.0
        %1027 = vmatpush1.xpose.msra.mxu0 0.0
        %1028 = vmatprep.subr.mxu0 0.0
        %1029 = vmatpush1.xpose.msra.mxu0 0.0
        %1030 = vmatprep.subr.mxu0 0.0
        %1031 = vmatpush1.xpose.msra.mxu0 0.0
        %1032 = vmatprep.subr.mxu0 0.0
        %1033 = vmatpush1.xpose.msra.mxu0 0.0
        %1034 = vmatprep.subr.mxu0 0.0
        %1035 = vmatpush1.xpose.msra.mxu0 0.0
        %1036 = vmatprep.subr.mxu0 0.0
        %1037 = vmatpush1.xpose.msra.mxu0 0.0
        %1038 = vmatprep.subr.mxu0 0.0
        %1039 = vmatpush1.xpose.msra.mxu0 0.0
        %1040 = vmatprep.subr.mxu0 0.0
        %1041 = vmatpush1.xpose.msra.mxu0 0.0
        %1042 = vmatprep.subr.mxu0 0.0
        %1043 = vmatpush1.xpose.msra.mxu0 0.0
        %1044 = vmatprep.subr.mxu0 0.0
        %1045 = vmatpush1.xpose.msra.mxu0 0.0
        %1046 = vmatprep.subr.mxu0 0.0
        %1047 = vmatpush1.xpose.msra.mxu0 0.0
        %1048 = vmatprep.subr.mxu0 0.0
        %1049 = vmatpush1.xpose.msra.mxu0 0.0
        %1050 = vmatprep.subr.mxu0 0.0
        %1051 = vmatpush1.xpose.msra.mxu0 0.0
        %1052 = vmatprep.subr.mxu0 0.0
        %1053 = vmatpush1.xpose.msra.mxu0 0.0
        %1054 = vmatprep.subr.mxu0 0.0
        %1055 = vmatpush1.xpose.msra.mxu0 0.0
        %1056 = vmatprep.subr.mxu0 0.0
        %1057 = vmatpush1.xpose.msra.mxu0 0.0
        %1058 = vmatprep.subr.mxu0 0.0
        %1059 = vmatpush1.xpose.msra.mxu0 0.0
        %1060 = vmatprep.subr.mxu0 0.0
        %1061 = vmatpush1.xpose.msra.mxu0 0.0
        %1062 = vmatprep.subr.mxu0 0.0
        %1063 = vmatpush1.xpose.msra.mxu0 0.0
        %1064 = vmatprep.subr.mxu0 0.0
        %1065 = vmatpush1.xpose.msra.mxu0 0.0
        %1066 = vmatprep.mubr.f32.mxu0 0.0
        %1067 = vmatmul.mubr.f32.gmra.mrb[0].mxu0 %v997
        %v1068 = vpop.f32.mrb[0].mxu0
        %v1069 = vadd.f32 0.0, %v1068
        %v1070 = vpop.f32.mrb[0].mxu0
        %1071 = vdwg.mxu0
        %v1072 = vsel %vm767, %v841, -inf
        %1073 = vmax.xlane.f32.xlu0 %v1072
        %v1074 = vpop.xlane.xlu0 %1073
        %v1075 = vsel %vm767, %v917, -inf
        %1076 = vmax.xlane.f32.xlu0 %v1075
        %v1077 = vpop.xlane.xlu0 %1076
        %v1078 = vsel %vm767, %v993, -inf
        %1079 = vmax.xlane.f32.xlu0 %v1078
        %v1080 = vpop.xlane.xlu0 %1079
        %v1081 = vsel %vm767, %v1069, -inf
        %1082 = vmax.xlane.f32.xlu0 %v1081
        %v1083 = vpop.xlane.xlu0 %1082
        %v1084 = vsub.f32 %v841, %v1074
        %v1085 = vsub.f32 %v917, %v1077
        %v1086 = vsub.f32 %v993, %v1080
        %v1087 = vsub.f32 %v1069, %v1083
        %v1088 = vmul.f32 %v1084, 1.442695
        %v1089 = vpow.pop %v1088
        %v1090 = vmul.f32 %v1085, 1.442695
        %v1091 = vpow.pop %v1090
        %v1092 = vmul.f32 %v1086, 1.442695
        %v1093 = vpow.pop %v1092
        %v1094 = vmul.f32 %v1087, 1.442695
        %v1095 = vpow.pop %v1094
        %v1096 = vsel %vm767, %v1089, 0.0
        %1097 = vadd.xlane.f32.xlu0 %v1096
        %v1098 = vpop.xlane.xlu0 %1097
        %v1099 = vsel %vm767, %v1091, 0.0
        %1100 = vadd.xlane.f32.xlu0 %v1099
        %v1101 = vpop.xlane.xlu0 %1100
        %v1102 = vsel %vm767, %v1093, 0.0
        %1103 = vadd.xlane.f32.xlu0 %v1102
        %v1104 = vpop.xlane.xlu0 %1103
        %v1105 = vsel %vm767, %v1095, 0.0
        %1106 = vadd.xlane.f32.xlu0 %v1105
        %v1107 = vpop.xlane.xlu0 %1106
        %v1108 = vrcp.pop %v1098
        %v1109 = vrcp.pop %v1101
        %v1110 = vrcp.pop %v1104
        %v1111 = vrcp.pop %v1107
        %v1112 = vmul.f32 %v1089, %v1108
        %v1113 = vmul.f32 %v1091, %v1109
        %v1114 = vmul.f32 %v1093, %v1110
        %v1115 = vmul.f32 %v1095, %v1111
        %v1116 = vpack.c.bf16 %v1112, %v1112
        %v1117 = vpack.c.bf16 %v1113, %v1113
        %v1118 = vpack.c.bf16 %v1114, %v1114
        %v1119 = vpack.c.bf16 %v1115, %v1115
        %v1120 = vpack.c.bf16 %v763, %v763
        %v1121 = vpack.c.bf16 %v764, %v764
        %v1122 = vpack.c.bf16 %v765, %v765
        %v1123 = vpack.c.bf16 %v766, %v766
        %v1125 = vsel %vm767, %v1116, 0
        %vm1127 = vcmask 1043456
        %v1129 = vsel %vm1127, %v1120, 0
        %1131 = vmatprep.subr.bf16.mxu0 0
        %1132 = vmatpush1.bf16.msra.mxu0 %v1129
        %1133 = vmatprep.subr.bf16.mxu0 0
        %1134 = vmatpush1.bf16.msra.mxu0 0
        %1135 = vmatprep.subr.bf16.mxu0 0
        %1136 = vmatpush1.bf16.msra.mxu0 0
        %1137 = vmatprep.subr.bf16.mxu0 0
        %1138 = vmatpush1.bf16.msra.mxu0 0
        %1139 = vmatprep.subr.bf16.mxu0 0
        %1140 = vmatpush1.bf16.msra.mxu0 0
        %1141 = vmatprep.subr.bf16.mxu0 0
        %1142 = vmatpush1.bf16.msra.mxu0 0
        %1143 = vmatprep.subr.bf16.mxu0 0
        %1144 = vmatpush1.bf16.msra.mxu0 0
        %1145 = vmatprep.subr.bf16.mxu0 0
        %1146 = vmatpush1.bf16.msra.mxu0 0
        %1147 = vmatprep.subr.bf16.mxu0 0
        %1148 = vmatpush1.bf16.msra.mxu0 0
        %1149 = vmatprep.subr.bf16.mxu0 0
        %1150 = vmatpush1.bf16.msra.mxu0 0
        %1151 = vmatprep.subr.bf16.mxu0 0
        %1152 = vmatpush1.bf16.msra.mxu0 0
        %1153 = vmatprep.subr.bf16.mxu0 0
        %1154 = vmatpush1.bf16.msra.mxu0 0
        %1155 = vmatprep.subr.bf16.mxu0 0
        %1156 = vmatpush1.bf16.msra.mxu0 0
        %1157 = vmatprep.subr.bf16.mxu0 0
        %1158 = vmatpush1.bf16.msra.mxu0 0
        %1159 = vmatprep.subr.bf16.mxu0 0
        %1160 = vmatpush1.bf16.msra.mxu0 0
        %1161 = vmatprep.subr.bf16.mxu0 0
        %1162 = vmatpush1.bf16.msra.mxu0 0
        %1163 = vmatprep.mubr.bf16.mxu0 0
        %1164 = vmatmul.mubr.bf16.gmra.mrb[0].mxu0 %v1125
        %v1165 = vpop.f32.mrb[0].mxu0
        %v1166 = vadd.f32 0.0, %v1165
        %v1167 = vpop.f32.mrb[0].mxu0
        %v1168 = vpop.f32.mrb[0].mxu0
        %v1169 = vpop.f32.mrb[0].mxu0
        %1170 = vdwg.mxu0
        %v1172 = vsel %vm767, %v1117, 0
        %v1175 = vsel %vm1127, %v1121, 0
        %1177 = vmatprep.subr.bf16.mxu0 0
        %1178 = vmatpush1.bf16.msra.mxu0 %v1175
        %1179 = vmatprep.subr.bf16.mxu0 0
        %1180 = vmatpush1.bf16.msra.mxu0 0
        %1181 = vmatprep.subr.bf16.mxu0 0
        %1182 = vmatpush1.bf16.msra.mxu0 0
        %1183 = vmatprep.subr.bf16.mxu0 0
        %1184 = vmatpush1.bf16.msra.mxu0 0
        %1185 = vmatprep.subr.bf16.mxu0 0
        %1186 = vmatpush1.bf16.msra.mxu0 0
        %1187 = vmatprep.subr.bf16.mxu0 0
        %1188 = vmatpush1.bf16.msra.mxu0 0
        %1189 = vmatprep.subr.bf16.mxu0 0
        %1190 = vmatpush1.bf16.msra.mxu0 0
        %1191 = vmatprep.subr.bf16.mxu0 0
        %1192 = vmatpush1.bf16.msra.mxu0 0
        %1193 = vmatprep.subr.bf16.mxu0 0
        %1194 = vmatpush1.bf16.msra.mxu0 0
        %1195 = vmatprep.subr.bf16.mxu0 0
        %1196 = vmatpush1.bf16.msra.mxu0 0
        %1197 = vmatprep.subr.bf16.mxu0 0
        %1198 = vmatpush1.bf16.msra.mxu0 0
        %1199 = vmatprep.subr.bf16.mxu0 0
        %1200 = vmatpush1.bf16.msra.mxu0 0
        %1201 = vmatprep.subr.bf16.mxu0 0
        %1202 = vmatpush1.bf16.msra.mxu0 0
        %1203 = vmatprep.subr.bf16.mxu0 0
        %1204 = vmatpush1.bf16.msra.mxu0 0
        %1205 = vmatprep.subr.bf16.mxu0 0
        %1206 = vmatpush1.bf16.msra.mxu0 0
        %1207 = vmatprep.subr.bf16.mxu0 0
        %1208 = vmatpush1.bf16.msra.mxu0 0
        %1209 = vmatprep.mubr.bf16.mxu0 0
        %1210 = vmatmul.mubr.bf16.gmra.mrb[0].mxu0 %v1172
        %v1211 = vpop.f32.mrb[0].mxu0
        %v1212 = vadd.f32 0.0, %v1211
        %v1213 = vpop.f32.mrb[0].mxu0
        %v1214 = vpop.f32.mrb[0].mxu0
        %v1215 = vpop.f32.mrb[0].mxu0
        %1216 = vdwg.mxu0
        %v1218 = vsel %vm767, %v1118, 0
        %v1221 = vsel %vm1127, %v1122, 0
        %1223 = vmatprep.subr.bf16.mxu0 0
        %1224 = vmatpush1.bf16.msra.mxu0 %v1221
        %1225 = vmatprep.subr.bf16.mxu0 0
        %1226 = vmatpush1.bf16.msra.mxu0 0
        %1227 = vmatprep.subr.bf16.mxu0 0
        %1228 = vmatpush1.bf16.msra.mxu0 0
        %1229 = vmatprep.subr.bf16.mxu0 0
        %1230 = vmatpush1.bf16.msra.mxu0 0
        %1231 = vmatprep.subr.bf16.mxu0 0
        %1232 = vmatpush1.bf16.msra.mxu0 0
        %1233 = vmatprep.subr.bf16.mxu0 0
        %1234 = vmatpush1.bf16.msra.mxu0 0
        %1235 = vmatprep.subr.bf16.mxu0 0
        %1236 = vmatpush1.bf16.msra.mxu0 0
        %1237 = vmatprep.subr.bf16.mxu0 0
        %1238 = vmatpush1.bf16.msra.mxu0 0
        %1239 = vmatprep.subr.bf16.mxu0 0
        %1240 = vmatpush1.bf16.msra.mxu0 0
        %1241 = vmatprep.subr.bf16.mxu0 0
        %1242 = vmatpush1.bf16.msra.mxu0 0
        %1243 = vmatprep.subr.bf16.mxu0 0
        %1244 = vmatpush1.bf16.msra.mxu0 0
        %1245 = vmatprep.subr.bf16.mxu0 0
        %1246 = vmatpush1.bf16.msra.mxu0 0
        %1247 = vmatprep.subr.bf16.mxu0 0
        %1248 = vmatpush1.bf16.msra.mxu0 0
        %1249 = vmatprep.subr.bf16.mxu0 0
        %1250 = vmatpush1.bf16.msra.mxu0 0
        %1251 = vmatprep.subr.bf16.mxu0 0
        %1252 = vmatpush1.bf16.msra.mxu0 0
        %1253 = vmatprep.subr.bf16.mxu0 0
        %1254 = vmatpush1.bf16.msra.mxu0 0
        %1255 = vmatprep.mubr.bf16.mxu0 0
        %1256 = vmatmul.mubr.bf16.gmra.mrb[0].mxu0 %v1218
        %v1257 = vpop.f32.mrb[0].mxu0
        %v1258 = vadd.f32 0.0, %v1257
        %v1259 = vpop.f32.mrb[0].mxu0
        %v1260 = vpop.f32.mrb[0].mxu0
        %v1261 = vpop.f32.mrb[0].mxu0
        %1262 = vdwg.mxu0
        %v1264 = vsel %vm767, %v1119, 0
        %v1267 = vsel %vm1127, %v1123, 0
        %1269 = vmatprep.subr.bf16.mxu0 0
        %1270 = vmatpush1.bf16.msra.mxu0 %v1267
        %1271 = vmatprep.subr.bf16.mxu0 0
        %1272 = vmatpush1.bf16.msra.mxu0 0
        %1273 = vmatprep.subr.bf16.mxu0 0
        %1274 = vmatpush1.bf16.msra.mxu0 0
        %1275 = vmatprep.subr.bf16.mxu0 0
        %1276 = vmatpush1.bf16.msra.mxu0 0
        %1277 = vmatprep.subr.bf16.mxu0 0
        %1278 = vmatpush1.bf16.msra.mxu0 0
        %1279 = vmatprep.subr.bf16.mxu0 0
        %1280 = vmatpush1.bf16.msra.mxu0 0
        %1281 = vmatprep.subr.bf16.mxu0 0
        %1282 = vmatpush1.bf16.msra.mxu0 0
        %1283 = vmatprep.subr.bf16.mxu0 0
        %1284 = vmatpush1.bf16.msra.mxu0 0
        %1285 = vmatprep.subr.bf16.mxu0 0
        %1286 = vmatpush1.bf16.msra.mxu0 0
        %1287 = vmatprep.subr.bf16.mxu0 0
        %1288 = vmatpush1.bf16.msra.mxu0 0
        %1289 = vmatprep.subr.bf16.mxu0 0
        %1290 = vmatpush1.bf16.msra.mxu0 0
        %1291 = vmatprep.subr.bf16.mxu0 0
        %1292 = vmatpush1.bf16.msra.mxu0 0
        %1293 = vmatprep.subr.bf16.mxu0 0
        %1294 = vmatpush1.bf16.msra.mxu0 0
        %1295 = vmatprep.subr.bf16.mxu0 0
        %1296 = vmatpush1.bf16.msra.mxu0 0
        %1297 = vmatprep.subr.bf16.mxu0 0
        %1298 = vmatpush1.bf16.msra.mxu0 0
        %1299 = vmatprep.subr.bf16.mxu0 0
        %1300 = vmatpush1.bf16.msra.mxu0 0
        %1301 = vmatprep.mubr.bf16.mxu0 0
        %1302 = vmatmul.mubr.bf16.gmra.mrb[0].mxu0 %v1264
        %v1303 = vpop.f32.mrb[0].mxu0
        %v1304 = vadd.f32 0.0, %v1303
        %v1305 = vpop.f32.mrb[0].mxu0
        %v1306 = vpop.f32.mrb[0].mxu0
        %v1307 = vpop.f32.mrb[0].mxu0
        %1308 = vdwg.mxu0
        %v1309 = vcombine.low %v1166, %v1258
        %v1310 = vcombine.high %v1166, %v1258
        %v1312 = vunpack.c.l.s4 1983009808
        %v1313 = vunpack.c.0.s8 %v1312
        %v1314 = vlaneseq
        %v1315 = vshrl.u32 %v1314, 7
        %v1316 = vsub.s32 %v1313, %v1315
        %v1317 = vrot.slane %v1309, %v1316
        %v1319 = vunpack.c.l.s4 1983009808
        %v1320 = vunpack.c.0.s8 %v1319
        %v1321 = vlaneseq
        %v1322 = vshrl.u32 %v1321, 7
        %v1323 = vsub.s32 %v1320, %v1322
        %v1324 = vrot.slane %v1310, %v1323
        %v1325 = vcombine.low %v1212, %v1304
        %v1326 = vcombine.high %v1212, %v1304
        %v1328 = vunpack.c.l.s4 1983009808
        %v1329 = vunpack.c.0.s8 %v1328
        %v1330 = vlaneseq
        %v1331 = vshrl.u32 %v1330, 7
        %v1332 = vsub.s32 %v1329, %v1331
        %v1333 = vrot.slane %v1325, %v1332
        %v1335 = vunpack.c.l.s4 1983009808
        %v1336 = vunpack.c.0.s8 %v1335
        %v1337 = vlaneseq
        %v1338 = vshrl.u32 %v1337, 7
        %v1339 = vsub.s32 %v1336, %v1338
        %v1340 = vrot.slane %v1326, %v1339
        %v1341 = vcombine.low %v1317, %v1333
        %v1342 = vcombine.high %v1317, %v1333
        %v1344 = vunpack.c.l.s4 1934713408
        %v1345 = vunpack.c.0.s8 %v1344
        %v1346 = vlaneseq
        %v1347 = vshrl.u32 %v1346, 7
        %v1348 = vsub.s32 %v1345, %v1347
        %v1349 = vrot.slane %v1341, %v1348
        %v1351 = vunpack.c.l.s4 1934713408
        %v1352 = vunpack.c.0.s8 %v1351
        %v1353 = vlaneseq
        %v1354 = vshrl.u32 %v1353, 7
        %v1355 = vsub.s32 %v1352, %v1354
        %v1356 = vrot.slane %v1342, %v1355
        %v1357 = vcombine.low %v1324, %v1340
        %v1358 = vcombine.high %v1324, %v1340
        %v1360 = vunpack.c.l.s4 1934713408
        %v1361 = vunpack.c.0.s8 %v1360
        %v1362 = vlaneseq
        %v1363 = vshrl.u32 %v1362, 7
        %v1364 = vsub.s32 %v1361, %v1363
        %v1365 = vrot.slane %v1357, %v1364
        %v1367 = vunpack.c.l.s4 1934713408
        %v1368 = vunpack.c.0.s8 %v1367
        %v1369 = vlaneseq
        %v1370 = vshrl.u32 %v1369, 7
        %v1371 = vsub.s32 %v1368, %v1370
        %v1372 = vrot.slane %v1358, %v1371
        %v1373 = vcombine.high %v1349, 0.0
        %v1374 = vcombine.high %v1356, 0.0
        %v1375 = vcombine.high %v1365, 0.0
        %v1376 = vcombine.high %v1372, 0.0
        %v1377 = vcombine.low %v1349, %v1356
        %v1379 = vunpack.c.l.s4 1983009808
        %v1380 = vunpack.c.0.s8 %v1379
        %v1381 = vlaneseq
        %v1382 = vshrl.u32 %v1381, 7
        %v1383 = vsub.s32 %v1380, %v1382
        %v1384 = vrot.slane %v1377, %v1383
        %v1385 = vcombine.low %v1373, %v1374
        %v1387 = vunpack.c.l.s4 1983009808
        %v1388 = vunpack.c.0.s8 %v1387
        %v1389 = vlaneseq
        %v1390 = vshrl.u32 %v1389, 7
        %v1391 = vsub.s32 %v1388, %v1390
        %v1392 = vrot.slane %v1385, %v1391
        %v1393 = vcombine.low %v1365, %v1372
        %v1395 = vunpack.c.l.s4 1983009808
        %v1396 = vunpack.c.0.s8 %v1395
        %v1397 = vlaneseq
        %v1398 = vshrl.u32 %v1397, 7
        %v1399 = vsub.s32 %v1396, %v1398
        %v1400 = vrot.slane %v1393, %v1399
        %v1401 = vcombine.low %v1375, %v1376
        %v1403 = vunpack.c.l.s4 1983009808
        %v1404 = vunpack.c.0.s8 %v1403
        %v1405 = vlaneseq
        %v1406 = vshrl.u32 %v1405, 7
        %v1407 = vsub.s32 %v1404, %v1406
        %v1408 = vrot.slane %v1401, %v1407
        %v1409 = vcombine.low %v1384, %v1392
        %v1410 = vcombine.high %v1384, %v1392
        %v1412 = vunpack.c.l.s4 1934713408
        %v1413 = vunpack.c.0.s8 %v1412
        %v1414 = vlaneseq
        %v1415 = vshrl.u32 %v1414, 7
        %v1416 = vsub.s32 %v1413, %v1415
        %v1417 = vrot.slane %v1409, %v1416
        %v1419 = vunpack.c.l.s4 1934713408
        %v1420 = vunpack.c.0.s8 %v1419
        %v1421 = vlaneseq
        %v1422 = vshrl.u32 %v1421, 7
        %v1423 = vsub.s32 %v1420, %v1422
        %v1424 = vrot.slane %v1410, %v1423
        %v1425 = vcombine.low %v1400, %v1408
        %v1426 = vcombine.high %v1400, %v1408
        %v1428 = vunpack.c.l.s4 1934713408
        %v1429 = vunpack.c.0.s8 %v1428
        %v1430 = vlaneseq
        %v1431 = vshrl.u32 %v1430, 7
        %v1432 = vsub.s32 %v1429, %v1431
        %v1433 = vrot.slane %v1425, %v1432
        %v1435 = vunpack.c.l.s4 1934713408
        %v1436 = vunpack.c.0.s8 %v1435
        %v1437 = vlaneseq
        %v1438 = vshrl.u32 %v1437, 7
        %v1439 = vsub.s32 %v1436, %v1438
        %v1440 = vrot.slane %v1426, %v1439
        %v1441 = vcombine.low %v1417, %v1433
        %v1442 = vcombine.high %v1417, %v1433
        %v1443 = vcombine.low %v1424, %v1440
        %v1444 = vcombine.high %v1424, %v1440
        %1446 = vrot.lane.b32.xlu0 %v1442, 8
        %v1447 = vpop.permute.xlu0 %1446
        %1450 = vrot.lane.b32.xlu0 %v1443, 16
        %v1451 = vpop.permute.xlu0 %1450
        %1454 = vrot.lane.b32.xlu0 %v1444, 24
        %v1455 = vpop.permute.xlu0 %1454
        %v1457 = vsel %vm767, %v1441, %v1447
        %vm1458 = vcmask 130048
        %v1459 = vsel %vm1458, %v1457, %v1451
        %vm1460 = vcmask 195584
        %v1461 = vsel %vm1460, %v1459, %v1455
        %v1462 = vpack.c.bf16 %v1461, %v1461
        %v1463 = vld [vmem:[%s3] sm:$0xf]
        %v1464 = vld [vmem:[%s3 + $0x4] sm:$0xf]
        %v1465 = vld [vmem:[%s3 + $0x8] sm:$0xf]
        %v1466 = vld [vmem:[%s3 + $0xc] sm:$0xf]
        %v1467 = vld [vmem:[%s4] sm:$0x1]
        %v1469 = vlaneseq
        %v1470 = vshrl.u32 %v1469, 7
        %v1471 = vsub.s32 0, %v1470
        %v1472 = vrot.slane %v1467, %v1471
        %v1478 = vunpack.c.l.b16 %v1463
        %v1479 = vunpack.c.l.b16 %v1464
        %v1480 = vunpack.c.l.b16 %v1465
        %v1481 = vunpack.c.l.b16 %v1466
        %v1482 = vpack.c.b16 %v1479, %v1478
        %v1483 = vpack.c.b16 %v1481, %v1480
        %v1487 = vsel %vm281, %v1462, 0
        %1489 = vmatprep.subr.bf16.mxu0 0
        %1490 = vmatpush1.bf16.msra.mxu0 %v1482
        %1491 = vmatprep.subr.bf16.mxu0 0
        %1492 = vmatpush1.bf16.msra.mxu0 %v1483
        %1493 = vmatprep.subr.bf16.mxu0 0
        %1494 = vmatpush1.bf16.msra.mxu0 0
        %1495 = vmatprep.subr.bf16.mxu0 0
        %1496 = vmatpush1.bf16.msra.mxu0 0
        %1497 = vmatprep.subr.bf16.mxu0 0
        %1498 = vmatpush1.bf16.msra.mxu0 0
        %1499 = vmatprep.subr.bf16.mxu0 0
        %1500 = vmatpush1.bf16.msra.mxu0 0
        %1501 = vmatprep.subr.bf16.mxu0 0
        %1502 = vmatpush1.bf16.msra.mxu0 0
        %1503 = vmatprep.subr.bf16.mxu0 0
        %1504 = vmatpush1.bf16.msra.mxu0 0
        %1505 = vmatprep.subr.bf16.mxu0 0
        %1506 = vmatpush1.bf16.msra.mxu0 0
        %1507 = vmatprep.subr.bf16.mxu0 0
        %1508 = vmatpush1.bf16.msra.mxu0 0
        %1509 = vmatprep.subr.bf16.mxu0 0
        %1510 = vmatpush1.bf16.msra.mxu0 0
        %1511 = vmatprep.subr.bf16.mxu0 0
        %1512 = vmatpush1.bf16.msra.mxu0 0
        %1513 = vmatprep.subr.bf16.mxu0 0
        %1514 = vmatpush1.bf16.msra.mxu0 0
        %1515 = vmatprep.subr.bf16.mxu0 0
        %1516 = vmatpush1.bf16.msra.mxu0 0
        %1517 = vmatprep.subr.bf16.mxu0 0
        %1518 = vmatpush1.bf16.msra.mxu0 0
        %1519 = vmatprep.subr.bf16.mxu0 0
        %1520 = vmatpush1.bf16.msra.mxu0 0
        %1521 = vmatprep.mubr.bf16.mxu0 0
        %1522 = vmatmul.mubr.bf16.gmra.mrb[0].mxu0 %v1487
        %v1523 = vpop.f32.mrb[0].mxu0
        %v1524 = vadd.f32 %v1472, %v1523
        %v1525 = vpop.f32.mrb[0].mxu0
        %v1526 = vpop.f32.mrb[0].mxu0
        %v1527 = vpop.f32.mrb[0].mxu0
        %1528 = vdwg.mxu0
        %1529 = vst [vmem:[%s254] sm:$0xff] %v1524
        %p1530 = scmp.lt.s32.totalorder %s20, 1
        %s1531 = scalar_select %p1530, %s20, 1
        %s1532 = smul.addr %s1531, 8
        %s1533 = scalar_lea.vmem %s5, %s1532
        // Predicated region
        $region49: #{multi_headed_attention.1} parent=39 // pred_check
          %p1534 = pneg %p148
        $region50: #{multi_headed_attention.1} parent=39 // pred_check_branch
          %1536 = sbr.rel (%p1534) target = $region52
        $region51: #{multi_headed_attention.1} parent=39 // pred_region
          _
        $region52: #{multi_headed_attention.1} parent=39 // pred_fallthru
          _
      $region40: #{multi_headed_attention.1} parent=5 // pred_fallthru
        _
      %p1537 = scmp.le.s32.totalorder 2, %s15
      // Predicated region
      $region53: #{multi_headed_attention.1} parent=5 // pred_check
        %p1538 = pneg %p1537
      $region54: #{multi_headed_attention.1} parent=5 // pred_check_branch
        %1540 = sbr.rel (%p1538) target = $region56
      $region55: #{multi_headed_attention.1} parent=5 // pred_region
        %s1541 = ssub.s32 %s15, 2
        // Predicated region
        $region57: #{multi_headed_attention.1} parent=55 // pred_check
          %p1542 = pneg %p154
        $region58: #{multi_headed_attention.1} parent=55 // pred_check_branch
          %1544 = sbr.rel (%p1542) target = $region60
        $region59: #{multi_headed_attention.1} parent=55 // pred_region
          %p1545 = scmp.lt.s32.totalorder %s21, 1
          %s1546 = scalar_select %p1545, %s21, 1
          %s1547 = smul.addr %s1546, 8
          %s1548 = scalar_lea.vmem %s5, %s1547
        $region60: #{multi_headed_attention.1} parent=55 // pred_fallthru
          _
      $region56: #{multi_headed_attention.1} parent=5 // pred_fallthru
        _
    $region6: #{multi_headed_attention.1} parent=1 // loop_footer
      %s19 = sadd.s32 1, %s15
    $region7: #{multi_headed_attention.1} parent=1 // loop_footer_branch
      %14 = sbr.rel target = $region3
    $region8: #{multi_headed_attention.1} parent=1 // loop_exit
      _
    %1549 = vsyncpa [#allocation3], 1
    %s1550 = scalar_lea.sflag [#allocation3], 1
    %1551 = vsyncpa %s1550, 1
    %1552 = vsyncpa [#allocation5], 1

</llo_original>
